<compile_context>
chip_gen: v7x
topology: tpu7x:2x2x1
jax: 0.10.0
libtpu: 0.0.40
codegen_flags: <defaults>
</compile_context>

<pallas_src>
import functools

import jax
import jax.numpy as jnp
from jax import lax
from jax.experimental import pallas as pl
from jax.experimental.pallas import tpu as pltpu


_LANE = 128
_VMEM_LIMIT = 32 * 1024 * 1024   # ample on v5e/v6e/v7x now that conv2 is row-tiled
_T1 = 512                        # conv1 row tile (multiple of 16, bf16 sublanes)
_T2 = 256                        # conv2 row tile: 256x128 f32 acc = half the vregs
_UNROLL_MAX = 8                  # static unroll below this trip count, fori above
_C_S2D = 16                      # 2x2 space-to-depth channels (4*3=12) padded to 16


def _round_up(x, m):
    return (x + m - 1) // m * m


def _loop(n, body, init):
    """body(i, carry) -> carry; static Python unroll for short fixed trip counts,
    lax.fori_loop for long ones (real Inception-like resolutions)."""
    if n <= _UNROLL_MAX:
        carry = init
        for i in range(n):
            carry = body(i, carry)
        return carry
    return lax.fori_loop(0, n, body, init)


# ----------------------------------------------------------------------------- kernels

def _stem_pool_kernel(x_ref, w1_ref, sh1_ref, w2_ref, sh2_ref, rep_ref, y1_ref, *,
                      wsd, t1, num_t1, t2, num_t2, p2, w2cols, inv_area):
    """Per-image fused stem: conv1 (3x3 stride-2, expressed as a 2x2-tap conv over
    the space-to-depth input) + BN shift + ReLU into VMEM scratch, then conv2
    (3x3 valid) + BN shift + ReLU + masked global average pool.  Both convs are
    shifted-slice tap accumulations over the flattened (row-major, width `wsd`)
    spatial axis, row-tiled so only a (1, Cout) pooled f32 sum is carried.

    x_ref:   (Xrows, 16)      bf16  space-to-depth image, zero-padded rows/channels
    w1_ref:  (4, 16, C1)      bf16  s2d-effective conv1 weights (BN scale folded)
    sh1_ref: (1, C1)          f32   conv1 folded BN shift
    w2_ref:  (9, C1, C2)      bf16  conv2 weights (BN scale folded)
    sh2_ref: (1, C2)          f32   conv2 folded BN shift
    rep_ref: (1, C2)                pooled representations for this image
    y1_ref:  (num_t1*t1, C1)  bf16  VMEM scratch holding the conv1 activation
    """
    c1 = w1_ref.shape[-1]
    c2 = w2_ref.shape[-1]

    # ---- conv1: 4 space-to-depth taps, row-tiled; y1 never leaves VMEM.
    def c1_tile(c, carry):
        base = c * t1
        acc = jnp.zeros((t1, c1), jnp.float32)
        for t in range(4):                               # taps (a, b) in {0,1}^2
            off = (t // 2) * wsd + (t % 2)
            xs = x_ref[pl.ds(base + off, t1), :]
            acc = acc + jnp.dot(xs, w1_ref[t], preferred_element_type=jnp.float32)
        y1_ref[pl.ds(base, t1), :] = jnp.maximum(
            acc + sh1_ref[...], 0.0).astype(y1_ref.dtype)
        return carry

    _loop(num_t1, c1_tile, 0)

    # ---- conv2 + masked global average pool: 9 taps, pooled-sum carried in vregs.
    def c2_tile(c, pooled):
        base = c * t2
        acc = jnp.zeros((t2, c2), jnp.float32)
        for t in range(9):                               # taps (di, dj) in {0,1,2}^2
            off = (t // 3) * wsd + (t % 3)
            ys = y1_ref[pl.ds(base + off, t2), :]
            acc = acc + jnp.dot(ys, w2_ref[t], preferred_element_type=jnp.float32)
        y = jnp.maximum(acc + sh2_ref[...], 0.0)         # f32 epilogue (v5e-safe)
        pos = base + lax.broadcasted_iota(jnp.int32, (t2, 1), 0)
        keep = jnp.logical_and(pos < p2, pos % wsd < w2cols)
        y = jnp.where(keep, y, 0.0)                      # drop wrap-around columns
        return pooled + jnp.sum(y, axis=0, keepdims=True)

    pooled = _loop(num_t2, c2_tile, jnp.zeros((1, c2), jnp.float32))
    rep_ref[...] = (pooled * inv_area).astype(rep_ref.dtype)


def _fc_kernel(x_ref, w_ref, b_ref, o_ref):
    """Batched replaced-fc head: (N, C) @ (C, E) + b, f32 accumulation."""
    o_ref[...] = (jnp.dot(x_ref[...], w_ref[...], preferred_element_type=jnp.float32)
                  + b_ref[...]).astype(o_ref.dtype)


# ----------------------------------------------------------------------------- wrappers

def _fused_stem_pool(x_s2d, w1e, sh1, w2f, sh2, *, wsd, t1, num_t1, t2, num_t2,
                     p2, w2cols, n_valid, out_dtype):
    n, xrows, _ = x_s2d.shape
    c1 = w1e.shape[-1]
    c2 = w2f.shape[-1]
    kernel = functools.partial(
        _stem_pool_kernel, wsd=wsd, t1=t1, num_t1=num_t1, t2=t2, num_t2=num_t2,
        p2=p2, w2cols=w2cols, inv_area=1.0 / float(n_valid))
    flops = 2 * n * (num_t1 * t1 * 4 * _C_S2D * c1 + num_t2 * t2 * 9 * c1 * c2)
    bytes_accessed = (n * (xrows * _C_S2D * 2 + c2 * 4)
                      + 4 * _C_S2D * c1 * 2 + 9 * c1 * c2 * 2 + (c1 + c2) * 4)
    reps3 = pl.pallas_call(
        kernel,
        out_shape=jax.ShapeDtypeStruct((n, 1, c2), out_dtype),
        grid=(n,),
        in_specs=[
            pl.BlockSpec((None, xrows, _C_S2D), lambda i: (i, 0, 0)),   # one image
            # Resident (constant index_map) operands, <100 KiB total, so the default
            # double-buffering is cheap; pl.Buffered(1) omitted for compatibility.
            pl.BlockSpec((4, _C_S2D, c1), lambda i: (0, 0, 0)),
            pl.BlockSpec((1, c1), lambda i: (0, 0)),
            pl.BlockSpec((9, c1, c2), lambda i: (0, 0, 0)),
            pl.BlockSpec((1, c2), lambda i: (0, 0)),
        ],
        out_specs=pl.BlockSpec((None, 1, c2), lambda i: (i, 0, 0)),     # lane-dense
        scratch_shapes=[pltpu.VMEM((num_t1 * t1, c1), jnp.bfloat16)],
        compiler_params=pltpu.CompilerParams(
            dimension_semantics=("parallel",),     # images shard across cores (v7x)
            vmem_limit_bytes=_VMEM_LIMIT),
        cost_estimate=pl.CostEstimate(flops=flops, transcendentals=0,
                                      bytes_accessed=bytes_accessed),
    )(x_s2d, w1e, sh1, w2f, sh2)
    return reps3[:, 0, :]


def _fc_head(reps, fc_w, fc_b, out_dtype):
    n = reps.shape[0]
    e = fc_w.shape[-1]
    return pl.pallas_call(
        _fc_kernel,
        out_shape=jax.ShapeDtypeStruct((n, e), out_dtype),
    )(reps, fc_w, fc_b)


# ----------------------------------------------------------------------------- glue

def init_params(key, embed_size=32, feat_ch=128, c1=32):
    """Deterministic synthetic parameters (stand-in for pretrained Inception-v3),
    with BN folded into the conv weights once, host-side."""
    assert feat_ch % _LANE == 0, "feat_ch must be a multiple of 128 (lane width)"
    ks = jax.random.split(key, 8)
    eps = 1e-3  # Inception BN eps

    # stem conv1: 3x3, stride 2, 3 -> c1 (a la Conv2d_1a_3x3) + BN
    w1 = jax.random.normal(ks[0], (3, 3, 3, c1), jnp.float32) * 0.1
    g1 = jnp.abs(jax.random.normal(ks[1], (c1,))) + 0.5
    b1 = jax.random.normal(ks[2], (c1,)) * 0.1
    m1 = jax.random.normal(ks[3], (c1,)) * 0.1
    v1 = jnp.abs(jax.random.normal(ks[4], (c1,))) + 0.5
    # stem conv2: 3x3, stride 1, c1 -> feat_ch (stand-in for fc.in_features=2048) + BN
    w2 = jax.random.normal(ks[5], (3, 3, c1, feat_ch), jnp.float32) * 0.1
    g2, b2 = jnp.ones((feat_ch,)), jnp.zeros((feat_ch,))
    m2, v2 = jnp.zeros((feat_ch,)), jnp.ones((feat_ch,))
    # replaced fc head: xavier_uniform_ weight, zero bias (as in EncoderCNN.__init__)
    limit = (6.0 / (feat_ch + embed_size)) ** 0.5
    fc_w = jax.random.uniform(ks[6], (feat_ch, embed_size), jnp.float32, -limit, limit)
    fc_b = jnp.zeros((1, embed_size), jnp.float32)

    # ---- one-time host-side transforms: fold BN scale into the conv weights.
    s1 = g1 / jnp.sqrt(v1 + eps)
    sh1 = (b1 - m1 * s1).reshape(1, c1)
    w1s = w1 * s1                                   # (3, 3, 3, c1) HWIO, scale folded
    s2 = g2 / jnp.sqrt(v2 + eps)
    sh2 = (b2 - m2 * s2).reshape(1, feat_ch)
    w2s = w2 * s2                                   # (3, 3, c1, feat_ch)

    # conv1 re-expressed over the 2x2 space-to-depth input: 4 taps of (16, c1).
    # s2d channel layout is (p*2 + q)*3 + ci (p, q = intra-2x2 offsets), padded to 16.
    w1e = jnp.zeros((4, _C_S2D, c1), jnp.float32)
    for a in (0, 1):
        for b in (0, 1):
            for p in (0, 1):
                for q in (0, 1):
                    di, dj = 2 * a + p, 2 * b + q
                    if di < 3 and dj < 3:
                        ch = (p * 2 + q) * 3
                        w1e = w1e.at[a * 2 + b, ch:ch + 3, :].set(w1s[di, dj])

    return dict(
        w1e=w1e.astype(jnp.bfloat16), sh1=sh1.astype(jnp.float32),
        w2f=w2s.reshape(9, c1, feat_ch).astype(jnp.bfloat16),
        sh2=sh2.astype(jnp.float32),
        fc_w=fc_w, fc_b=fc_b,
        # f32 HWIO copies of the scale-folded conv weights for the pure-JAX reference
        ref_w1=w1s, ref_w2=w2s)


@functools.partial(jax.jit, static_argnames=("need_rep",))
def encoder_cnn_forward(images, params, need_rep=False):
    """images: (N, 3, H, W) NCHW float32 — same convention as the PyTorch module."""
    out_dtype = images.dtype
    n, c, h, w = images.shape
    assert c == 3 and h >= 7 and w >= 7, "stem expects RGB images of at least 7x7"

    # ---- static geometry for the flattened, row-tiled tap-accumulation indexing.
    hs, wsd = _round_up(h, 2) // 2, _round_up(w, 2) // 2     # space-to-depth grid
    h1, w1_ = hs - 1, wsd - 1                                # conv1 output (stride 2)
    h2, w2_ = h1 - 2, w1_ - 2                                # conv2 output (valid)
    p2 = (h2 - 1) * wsd + w2_                                # conv2 flat positions
    t2 = min(_T2, _round_up(p2, 16))
    num_t2 = _round_up(p2, t2) // t2
    p1 = num_t2 * t2 + 2 * wsd + 2                           # conv1 rows conv2 reads
    t1 = min(_T1, _round_up(p1, 16))
    num_t1 = _round_up(p1, t1) // t1
    xrows = _round_up(num_t1 * t1 + wsd + 1, 16)             # s2d rows conv1 reads

    # ---- layout plumbing only (no im2col, no compute): NCHW -> NHWC -> pad H/W to
    # even -> 2x2 space-to-depth -> flatten rows -> zero-pad rows / channels to 16.
    x = jnp.transpose(images, (0, 2, 3, 1))
    x = jnp.pad(x, ((0, 0), (0, 2 * hs - h), (0, 2 * wsd - w), (0, 0)))
    x = x.reshape(n, hs, 2, wsd, 2, c).transpose(0, 1, 3, 2, 4, 5)
    x = x.reshape(n, hs * wsd, 4 * c)
    x = jnp.pad(x, ((0, 0), (0, xrows - hs * wsd), (0, _C_S2D - 4 * c)))
    x = x.astype(jnp.bfloat16)

    # ---- fused per-image conv1 + conv2 + global average pool (reps only).
    representations = _fused_stem_pool(
        x, params["w1e"], params["sh1"], params["w2f"], params["sh2"],
        wsd=wsd, t1=t1, num_t1=num_t1, t2=t2, num_t2=num_t2,
        p2=p2, w2cols=w2_, n_valid=h2 * w2_, out_dtype=out_dtype)

    # ---- replaced fc head, once over the whole batch (out of the per-image kernel).
    features = _fc_head(representations, params["fc_w"], params["fc_b"], out_dtype)

    if need_rep:
        # torch: representations.squeeze(): (N, C, 1, 1) -> (N, C); already (N, C).
        return features, representations
    return features


# ----------------------------------------------------------------------------- reference

def _reference_forward(images, params):
    """Pure-JAX f32 reference of the same stand-in stem (for a tolerance check)."""
    x = jnp.transpose(images, (0, 2, 3, 1)).astype(jnp.float32)
    y = jax.lax.conv_general_dilated(x, params["ref_w1"], (2, 2), "VALID",
                                     dimension_numbers=("NHWC", "HWIO", "NHWC"))
    y = jnp.maximum(y + params["sh1"].reshape(1, 1, 1, -1), 0.0)
    z = jax.lax.conv_general_dilated(y, params["ref_w2"], (1, 1), "VALID",
                                     dimension_numbers=("NHWC", "HWIO", "NHWC"))
    z = jnp.maximum(z + params["sh2"].reshape(1, 1, 1, -1), 0.0)
    pooled = jnp.mean(z, axis=(1, 2))
    feats = pooled @ params["fc_w"] + params["fc_b"]
    return feats, pooled


# ----------------------------------------------------------------------------- main

if __name__ == "__main__":
    key = jax.random.PRNGKey(0)
    k_img, k_par = jax.random.split(key)

    embed_size = 32
    feat_ch = 128
    images = jax.random.normal(k_img, (2, 3, 16, 16), jnp.float32)   # NCHW
    params = init_params(k_par, embed_size=embed_size, feat_ch=feat_ch)

    feats, reps = encoder_cnn_forward(images, params, need_rep=True)
    jax.block_until_ready((feats, reps))

    assert feats.shape == (2, embed_size)
    assert reps.shape == (2, feat_ch)
    assert bool(jnp.all(jnp.isfinite(feats))) and bool(jnp.all(jnp.isfinite(reps)))

    ref_feats, ref_reps = _reference_forward(images, params)
    assert jnp.allclose(feats, ref_feats, atol=5e-2, rtol=5e-2), "features mismatch"
    assert jnp.allclose(reps, ref_reps, atol=5e-2, rtol=5e-2), "representations mismatch"

    print("KERNEL_OK")
</pallas_src>

<mosaic_0001>
module attributes {stable_mosaic.version = 11 : i64} {
  func.func @_stem_pool_kernel(%arg0: i32, %arg1: memref<1x96x16xbf16, #tpu.memory_space<vmem>>, %arg2: memref<4x16x32xbf16, #tpu.memory_space<vmem>>, %arg3: memref<1x32xf32, #tpu.memory_space<vmem>>, %arg4: memref<9x32x128xbf16, #tpu.memory_space<vmem>>, %arg5: memref<1x128xf32, #tpu.memory_space<vmem>>, %arg6: memref<1x1x128xf32, #tpu.memory_space<vmem>>, %arg7: memref<80x32xbf16, #tpu.memory_space<vmem>>) attributes {dimension_semantics = [#tpu.dimension_semantics<parallel>], iteration_bounds = array<i64: 2>, scalar_prefetch = 0 : i64, scratch_operands = 1 : i64, tpu.core_type = #tpu.core_type<tc>, window_params = [{transform_indices = @transform_0, window_bounds = array<i64: 1, 96, 16>}, {pipeline_mode = #tpu.pipeline_mode<synchronous>, transform_indices = @transform_1, window_bounds = array<i64: 4, 16, 32>}, {pipeline_mode = #tpu.pipeline_mode<synchronous>, transform_indices = @transform_2, window_bounds = array<i64: 1, 32>}, {pipeline_mode = #tpu.pipeline_mode<synchronous>, transform_indices = @transform_3, window_bounds = array<i64: 9, 32, 128>}, {pipeline_mode = #tpu.pipeline_mode<synchronous>, transform_indices = @transform_4, window_bounds = array<i64: 1, 128>}, {transform_indices = @transform_5, window_bounds = array<i64: 1, 1, 128>}]} {
    %cst = arith.constant 0.000000e+00 : f32
    %0 = vector.broadcast %cst : f32 to vector<80x32xf32>
    %c0 = arith.constant 0 : index
    %c0_0 = arith.constant 0 : index
    %c0_1 = arith.constant 0 : index
    %1 = vector.load %arg1[%c0, %c0_0, %c0_1] : memref<1x96x16xbf16, #tpu.memory_space<vmem>>, vector<1x80x16xbf16>
    %2 = vector.shape_cast %1 : vector<1x80x16xbf16> to vector<80x16xbf16>
    %c0_2 = arith.constant 0 : index
    %c0_3 = arith.constant 0 : index
    %c0_4 = arith.constant 0 : index
    %3 = vector.load %arg2[%c0_2, %c0_3, %c0_4] : memref<4x16x32xbf16, #tpu.memory_space<vmem>>, vector<1x16x32xbf16>
    %4 = vector.shape_cast %3 : vector<1x16x32xbf16> to vector<16x32xbf16>
    %cst_5 = arith.constant dense<0.000000e+00> : vector<80x32xf32>
    %5 = tpu.matmul %2, %4, %cst_5 {dimension_numbers = #tpu.dot_dimension_numbers<[1], [0], [0], [1], [0, 0, 1, 1], [], []>} : vector<80x16xbf16>, vector<16x32xbf16>, vector<80x32xf32> -> vector<80x32xf32>
    %6 = arith.addf %0, %5 : vector<80x32xf32>
    %c0_6 = arith.constant 0 : index
    %c1 = arith.constant 1 : index
    %c0_7 = arith.constant 0 : index
    %7 = vector.load %arg1[%c0_6, %c1, %c0_7] : memref<1x96x16xbf16, #tpu.memory_space<vmem>>, vector<1x80x16xbf16>
    %8 = vector.shape_cast %7 : vector<1x80x16xbf16> to vector<80x16xbf16>
    %c1_8 = arith.constant 1 : index
    %c0_9 = arith.constant 0 : index
    %c0_10 = arith.constant 0 : index
    %9 = vector.load %arg2[%c1_8, %c0_9, %c0_10] : memref<4x16x32xbf16, #tpu.memory_space<vmem>>, vector<1x16x32xbf16>
    %10 = vector.shape_cast %9 : vector<1x16x32xbf16> to vector<16x32xbf16>
    %cst_11 = arith.constant dense<0.000000e+00> : vector<80x32xf32>
    %11 = tpu.matmul %8, %10, %cst_11 {dimension_numbers = #tpu.dot_dimension_numbers<[1], [0], [0], [1], [0, 0, 1, 1], [], []>} : vector<80x16xbf16>, vector<16x32xbf16>, vector<80x32xf32> -> vector<80x32xf32>
    %12 = arith.addf %6, %11 : vector<80x32xf32>
    %c0_12 = arith.constant 0 : index
    %c8 = arith.constant 8 : index
    %c0_13 = arith.constant 0 : index
    %13 = vector.load %arg1[%c0_12, %c8, %c0_13] : memref<1x96x16xbf16, #tpu.memory_space<vmem>>, vector<1x80x16xbf16>
    %14 = vector.shape_cast %13 : vector<1x80x16xbf16> to vector<80x16xbf16>
    %c2 = arith.constant 2 : index
    %c0_14 = arith.constant 0 : index
    %c0_15 = arith.constant 0 : index
    %15 = vector.load %arg2[%c2, %c0_14, %c0_15] : memref<4x16x32xbf16, #tpu.memory_space<vmem>>, vector<1x16x32xbf16>
    %16 = vector.shape_cast %15 : vector<1x16x32xbf16> to vector<16x32xbf16>
    %cst_16 = arith.constant dense<0.000000e+00> : vector<80x32xf32>
    %17 = tpu.matmul %14, %16, %cst_16 {dimension_numbers = #tpu.dot_dimension_numbers<[1], [0], [0], [1], [0, 0, 1, 1], [], []>} : vector<80x16xbf16>, vector<16x32xbf16>, vector<80x32xf32> -> vector<80x32xf32>
    %18 = arith.addf %12, %17 : vector<80x32xf32>
    %c0_17 = arith.constant 0 : index
    %c9 = arith.constant 9 : index
    %c0_18 = arith.constant 0 : index
    %19 = vector.load %arg1[%c0_17, %c9, %c0_18] : memref<1x96x16xbf16, #tpu.memory_space<vmem>>, vector<1x80x16xbf16>
    %20 = vector.shape_cast %19 : vector<1x80x16xbf16> to vector<80x16xbf16>
    %c3 = arith.constant 3 : index
    %c0_19 = arith.constant 0 : index
    %c0_20 = arith.constant 0 : index
    %21 = vector.load %arg2[%c3, %c0_19, %c0_20] : memref<4x16x32xbf16, #tpu.memory_space<vmem>>, vector<1x16x32xbf16>
    %22 = vector.shape_cast %21 : vector<1x16x32xbf16> to vector<16x32xbf16>
    %cst_21 = arith.constant dense<0.000000e+00> : vector<80x32xf32>
    %23 = tpu.matmul %20, %22, %cst_21 {dimension_numbers = #tpu.dot_dimension_numbers<[1], [0], [0], [1], [0, 0, 1, 1], [], []>} : vector<80x16xbf16>, vector<16x32xbf16>, vector<80x32xf32> -> vector<80x32xf32>
    %24 = arith.addf %18, %23 : vector<80x32xf32>
    %c0_22 = arith.constant 0 : index
    %c0_23 = arith.constant 0 : index
    %25 = vector.load %arg3[%c0_22, %c0_23] : memref<1x32xf32, #tpu.memory_space<vmem>>, vector<1x32xf32>
    %26 = vector.broadcast %25 : vector<1x32xf32> to vector<80x32xf32>
    %27 = arith.addf %24, %26 : vector<80x32xf32>
    %cst_24 = arith.constant 0.000000e+00 : f32
    %28 = vector.broadcast %cst_24 : f32 to vector<80x32xf32>
    %29 = arith.maximumf %27, %28 : vector<80x32xf32>
    %30 = arith.truncf %29 : vector<80x32xf32> to vector<80x32xbf16>
    %c0_25 = arith.constant 0 : index
    %c0_26 = arith.constant 0 : index
    %31 = vector.load %arg7[%c0_25, %c0_26] : memref<80x32xbf16, #tpu.memory_space<vmem>>, vector<80x32xbf16>
    tpu.vector_store %arg7[%c0_25, %c0_26], %30 {strides = array<i32>} : memref<80x32xbf16, #tpu.memory_space<vmem>>, vector<80x32xbf16>,
    %cst_27 = arith.constant 0.000000e+00 : f32
    %32 = vector.broadcast %cst_27 : f32 to vector<1x128xf32>
    %cst_28 = arith.constant 0.000000e+00 : f32
    %33 = vector.broadcast %cst_28 : f32 to vector<48x128xf32>
    %c0_29 = arith.constant 0 : index
    %c0_30 = arith.constant 0 : index
    %34 = vector.load %arg7[%c0_29, %c0_30] : memref<80x32xbf16, #tpu.memory_space<vmem>>, vector<48x32xbf16>
    %c0_31 = arith.constant 0 : index
    %c0_32 = arith.constant 0 : index
    %c0_33 = arith.constant 0 : index
    %35 = vector.load %arg4[%c0_31, %c0_32, %c0_33] : memref<9x32x128xbf16, #tpu.memory_space<vmem>>, vector<1x32x128xbf16>
    %36 = vector.shape_cast %35 : vector<1x32x128xbf16> to vector<32x128xbf16>
    %cst_34 = arith.constant dense<0.000000e+00> : vector<48x128xf32>
    %37 = tpu.matmul %34, %36, %cst_34 {dimension_numbers = #tpu.dot_dimension_numbers<[1], [0], [0], [1], [0, 0, 1, 1], [], []>} : vector<48x32xbf16>, vector<32x128xbf16>, vector<48x128xf32> -> vector<48x128xf32>
    %38 = arith.addf %33, %37 : vector<48x128xf32>
    %c1_35 = arith.constant 1 : index
    %c0_36 = arith.constant 0 : index
    %39 = vector.load %arg7[%c1_35, %c0_36] : memref<80x32xbf16, #tpu.memory_space<vmem>>, vector<48x32xbf16>
    %c1_37 = arith.constant 1 : index
    %c0_38 = arith.constant 0 : index
    %c0_39 = arith.constant 0 : index
    %40 = vector.load %arg4[%c1_37, %c0_38, %c0_39] : memref<9x32x128xbf16, #tpu.memory_space<vmem>>, vector<1x32x128xbf16>
    %41 = vector.shape_cast %40 : vector<1x32x128xbf16> to vector<32x128xbf16>
    %cst_40 = arith.constant dense<0.000000e+00> : vector<48x128xf32>
    %42 = tpu.matmul %39, %41, %cst_40 {dimension_numbers = #tpu.dot_dimension_numbers<[1], [0], [0], [1], [0, 0, 1, 1], [], []>} : vector<48x32xbf16>, vector<32x128xbf16>, vector<48x128xf32> -> vector<48x128xf32>
    %43 = arith.addf %38, %42 : vector<48x128xf32>
    %c2_41 = arith.constant 2 : index
    %c0_42 = arith.constant 0 : index
    %44 = vector.load %arg7[%c2_41, %c0_42] : memref<80x32xbf16, #tpu.memory_space<vmem>>, vector<48x32xbf16>
    %c2_43 = arith.constant 2 : index
    %c0_44 = arith.constant 0 : index
    %c0_45 = arith.constant 0 : index
    %45 = vector.load %arg4[%c2_43, %c0_44, %c0_45] : memref<9x32x128xbf16, #tpu.memory_space<vmem>>, vector<1x32x128xbf16>
    %46 = vector.shape_cast %45 : vector<1x32x128xbf16> to vector<32x128xbf16>
    %cst_46 = arith.constant dense<0.000000e+00> : vector<48x128xf32>
    %47 = tpu.matmul %44, %46, %cst_46 {dimension_numbers = #tpu.dot_dimension_numbers<[1], [0], [0], [1], [0, 0, 1, 1], [], []>} : vector<48x32xbf16>, vector<32x128xbf16>, vector<48x128xf32> -> vector<48x128xf32>
    %48 = arith.addf %43, %47 : vector<48x128xf32>
    %c8_47 = arith.constant 8 : index
    %c0_48 = arith.constant 0 : index
    %49 = vector.load %arg7[%c8_47, %c0_48] : memref<80x32xbf16, #tpu.memory_space<vmem>>, vector<48x32xbf16>
    %c3_49 = arith.constant 3 : index
    %c0_50 = arith.constant 0 : index
    %c0_51 = arith.constant 0 : index
    %50 = vector.load %arg4[%c3_49, %c0_50, %c0_51] : memref<9x32x128xbf16, #tpu.memory_space<vmem>>, vector<1x32x128xbf16>
    %51 = vector.shape_cast %50 : vector<1x32x128xbf16> to vector<32x128xbf16>
    %cst_52 = arith.constant dense<0.000000e+00> : vector<48x128xf32>
    %52 = tpu.matmul %49, %51, %cst_52 {dimension_numbers = #tpu.dot_dimension_numbers<[1], [0], [0], [1], [0, 0, 1, 1], [], []>} : vector<48x32xbf16>, vector<32x128xbf16>, vector<48x128xf32> -> vector<48x128xf32>
    %53 = arith.addf %48, %52 : vector<48x128xf32>
    %c9_53 = arith.constant 9 : index
    %c0_54 = arith.constant 0 : index
    %54 = vector.load %arg7[%c9_53, %c0_54] : memref<80x32xbf16, #tpu.memory_space<vmem>>, vector<48x32xbf16>
    %c4 = arith.constant 4 : index
    %c0_55 = arith.constant 0 : index
    %c0_56 = arith.constant 0 : index
    %55 = vector.load %arg4[%c4, %c0_55, %c0_56] : memref<9x32x128xbf16, #tpu.memory_space<vmem>>, vector<1x32x128xbf16>
    %56 = vector.shape_cast %55 : vector<1x32x128xbf16> to vector<32x128xbf16>
    %cst_57 = arith.constant dense<0.000000e+00> : vector<48x128xf32>
    %57 = tpu.matmul %54, %56, %cst_57 {dimension_numbers = #tpu.dot_dimension_numbers<[1], [0], [0], [1], [0, 0, 1, 1], [], []>} : vector<48x32xbf16>, vector<32x128xbf16>, vector<48x128xf32> -> vector<48x128xf32>
    %58 = arith.addf %53, %57 : vector<48x128xf32>
    %c10 = arith.constant 10 : index
    %c0_58 = arith.constant 0 : index
    %59 = vector.load %arg7[%c10, %c0_58] : memref<80x32xbf16, #tpu.memory_space<vmem>>, vector<48x32xbf16>
    %c5 = arith.constant 5 : index
    %c0_59 = arith.constant 0 : index
    %c0_60 = arith.constant 0 : index
    %60 = vector.load %arg4[%c5, %c0_59, %c0_60] : memref<9x32x128xbf16, #tpu.memory_space<vmem>>, vector<1x32x128xbf16>
    %61 = vector.shape_cast %60 : vector<1x32x128xbf16> to vector<32x128xbf16>
    %cst_61 = arith.constant dense<0.000000e+00> : vector<48x128xf32>
    %62 = tpu.matmul %59, %61, %cst_61 {dimension_numbers = #tpu.dot_dimension_numbers<[1], [0], [0], [1], [0, 0, 1, 1], [], []>} : vector<48x32xbf16>, vector<32x128xbf16>, vector<48x128xf32> -> vector<48x128xf32>
    %63 = arith.addf %58, %62 : vector<48x128xf32>
    %c16 = arith.constant 16 : index
    %c0_62 = arith.constant 0 : index
    %64 = vector.load %arg7[%c16, %c0_62] : memref<80x32xbf16, #tpu.memory_space<vmem>>, vector<48x32xbf16>
    %c6 = arith.constant 6 : index
    %c0_63 = arith.constant 0 : index
    %c0_64 = arith.constant 0 : index
    %65 = vector.load %arg4[%c6, %c0_63, %c0_64] : memref<9x32x128xbf16, #tpu.memory_space<vmem>>, vector<1x32x128xbf16>
    %66 = vector.shape_cast %65 : vector<1x32x128xbf16> to vector<32x128xbf16>
    %cst_65 = arith.constant dense<0.000000e+00> : vector<48x128xf32>
    %67 = tpu.matmul %64, %66, %cst_65 {dimension_numbers = #tpu.dot_dimension_numbers<[1], [0], [0], [1], [0, 0, 1, 1], [], []>} : vector<48x32xbf16>, vector<32x128xbf16>, vector<48x128xf32> -> vector<48x128xf32>
    %68 = arith.addf %63, %67 : vector<48x128xf32>
    %c17 = arith.constant 17 : index
    %c0_66 = arith.constant 0 : index
    %69 = vector.load %arg7[%c17, %c0_66] : memref<80x32xbf16, #tpu.memory_space<vmem>>, vector<48x32xbf16>
    %c7 = arith.constant 7 : index
    %c0_67 = arith.constant 0 : index
    %c0_68 = arith.constant 0 : index
    %70 = vector.load %arg4[%c7, %c0_67, %c0_68] : memref<9x32x128xbf16, #tpu.memory_space<vmem>>, vector<1x32x128xbf16>
    %71 = vector.shape_cast %70 : vector<1x32x128xbf16> to vector<32x128xbf16>
    %cst_69 = arith.constant dense<0.000000e+00> : vector<48x128xf32>
    %72 = tpu.matmul %69, %71, %cst_69 {dimension_numbers = #tpu.dot_dimension_numbers<[1], [0], [0], [1], [0, 0, 1, 1], [], []>} : vector<48x32xbf16>, vector<32x128xbf16>, vector<48x128xf32> -> vector<48x128xf32>
    %73 = arith.addf %68, %72 : vector<48x128xf32>
    %c18 = arith.constant 18 : index
    %c0_70 = arith.constant 0 : index
    %74 = vector.load %arg7[%c18, %c0_70] : memref<80x32xbf16, #tpu.memory_space<vmem>>, vector<48x32xbf16>
    %c8_71 = arith.constant 8 : index
    %c0_72 = arith.constant 0 : index
    %c0_73 = arith.constant 0 : index
    %75 = vector.load %arg4[%c8_71, %c0_72, %c0_73] : memref<9x32x128xbf16, #tpu.memory_space<vmem>>, vector<1x32x128xbf16>
    %76 = vector.shape_cast %75 : vector<1x32x128xbf16> to vector<32x128xbf16>
    %cst_74 = arith.constant dense<0.000000e+00> : vector<48x128xf32>
    %77 = tpu.matmul %74, %76, %cst_74 {dimension_numbers = #tpu.dot_dimension_numbers<[1], [0], [0], [1], [0, 0, 1, 1], [], []>} : vector<48x32xbf16>, vector<32x128xbf16>, vector<48x128xf32> -> vector<48x128xf32>
    %78 = arith.addf %73, %77 : vector<48x128xf32>
    %c0_75 = arith.constant 0 : index
    %c0_76 = arith.constant 0 : index
    %79 = vector.load %arg5[%c0_75, %c0_76] : memref<1x128xf32, #tpu.memory_space<vmem>>, vector<1x128xf32>
    %80 = vector.broadcast %79 : vector<1x128xf32> to vector<48x128xf32>
    %81 = arith.addf %78, %80 : vector<48x128xf32>
    %cst_77 = arith.constant 0.000000e+00 : f32
    %82 = vector.broadcast %cst_77 : f32 to vector<48x128xf32>
    %83 = arith.maximumf %81, %82 : vector<48x128xf32>
    %84 = tpu.iota {dimensions = array<i32: 0>} : vector<48x1xi32>
    %c0_i32 = arith.constant 0 : i32
    %85 = vector.broadcast %c0_i32 : i32 to vector<48x1xi32>
    %86 = arith.addi %85, %84 : vector<48x1xi32>
    %c37_i32 = arith.constant 37 : i32
    %87 = vector.broadcast %c37_i32 : i32 to vector<48x1xi32>
    %88 = arith.cmpi slt, %86, %87 : vector<48x1xi32>
    %c8_i32 = arith.constant 8 : i32
    %c0_i32_78 = arith.constant 0 : i32
    %89 = arith.cmpi eq, %c8_i32, %c0_i32_78 : i32
    %c1_i32 = arith.constant 1 : i32
    %90 = arith.select %89, %c1_i32, %c8_i32 : i32
    %91 = vector.broadcast %90 : i32 to vector<48x1xi32>
    %92 = arith.remsi %86, %91 : vector<48x1xi32>
    %c0_i32_79 = arith.constant 0 : i32
    %93 = vector.broadcast %c0_i32_79 : i32 to vector<48x1xi32>
    %94 = arith.cmpi ne, %92, %93 : vector<48x1xi32>
    %c0_i32_80 = arith.constant 0 : i32
    %95 = vector.broadcast %c0_i32_80 : i32 to vector<48x1xi32>
    %96 = arith.cmpi slt, %92, %95 : vector<48x1xi32>
    %c0_i32_81 = arith.constant 0 : i32
    %97 = arith.cmpi slt, %90, %c0_i32_81 : i32
    %98 = vector.broadcast %97 : i1 to vector<48x1xi1>
    %99 = vector.broadcast %98 : vector<48x1xi1> to vector<48x1xi1>
    %100 = arith.xori %96, %99 : vector<48x1xi1>
    %101 = arith.andi %100, %94 : vector<48x1xi1>
    %102 = vector.broadcast %90 : i32 to vector<48x1xi32>
    %103 = arith.addi %92, %102 : vector<48x1xi32>
    %104 = arith.select %101, %103, %92 : vector<48x1xi1>, vector<48x1xi32>
    %c5_i32 = arith.constant 5 : i32
    %105 = vector.broadcast %c5_i32 : i32 to vector<48x1xi32>
    %106 = arith.cmpi slt, %104, %105 : vector<48x1xi32>
    %107 = arith.andi %88, %106 : vector<48x1xi1>
    %cst_82 = arith.constant 0.000000e+00 : f32
    %108 = vector.shape_cast %107 : vector<48x1xi1> to vector<48x1xi1>
    %109 = vector.broadcast %108 : vector<48x1xi1> to vector<48x128xi1>
    %110 = vector.broadcast %cst_82 : f32 to vector<48x128xf32>
    %111 = arith.select %109, %83, %110 : vector<48x128xi1>, vector<48x128xf32>
    %cst_83 = arith.constant dense<0.000000e+00> : vector<128xf32>
    %112 = vector.multi_reduction <add>, %111, %cst_83 [0] : vector<48x128xf32> to vector<128xf32>
    %113 = vector.shape_cast %112 : vector<128xf32> to vector<1x128xf32>
    %114 = arith.addf %32, %113 : vector<1x128xf32>
    %cst_84 = arith.constant 4.000000e-02 : f32
    %115 = vector.broadcast %cst_84 : f32 to vector<1x128xf32>
    %116 = arith.mulf %114, %115 : vector<1x128xf32>
    %c0_85 = arith.constant 0 : index
    %c0_86 = arith.constant 0 : index
    %c0_87 = arith.constant 0 : index
    %117 = vector.load %arg6[%c0_85, %c0_86, %c0_87] : memref<1x1x128xf32, #tpu.memory_space<vmem>>, vector<1x1x128xf32>
    %118 = vector.shape_cast %117 : vector<1x1x128xf32> to vector<1x128xf32>
    %119 = vector.shape_cast %116 : vector<1x128xf32> to vector<1x1x128xf32>
    tpu.vector_store %arg6[%c0_85, %c0_86, %c0_87], %119 {strides = array<i32>} : memref<1x1x128xf32, #tpu.memory_space<vmem>>, vector<1x1x128xf32>,
    return
  }
  func.func @transform_0(%arg0: i32) -> (i32, i32, i32) {
    %c0_i32 = arith.constant 0 : i32
    %c0_i32_0 = arith.constant 0 : i32
    %c0_i32_1 = arith.constant 0 : i32
    return %arg0, %c0_i32, %c0_i32_0 : i32, i32, i32
  }
  func.func @transform_1(%arg0: i32) -> (i32, i32, i32) {
    %c0_i32 = arith.constant 0 : i32
    %c0_i32_0 = arith.constant 0 : i32
    %c0_i32_1 = arith.constant 0 : i32
    %c0_i32_2 = arith.constant 0 : i32
    return %c0_i32, %c0_i32_0, %c0_i32_1 : i32, i32, i32
  }
  func.func @transform_2(%arg0: i32) -> (i32, i32) {
    %c0_i32 = arith.constant 0 : i32
    %c0_i32_0 = arith.constant 0 : i32
    %c0_i32_1 = arith.constant 0 : i32
    return %c0_i32, %c0_i32_0 : i32, i32
  }
  func.func @transform_3(%arg0: i32) -> (i32, i32, i32) {
    %c0_i32 = arith.constant 0 : i32
    %c0_i32_0 = arith.constant 0 : i32
    %c0_i32_1 = arith.constant 0 : i32
    %c0_i32_2 = arith.constant 0 : i32
    return %c0_i32, %c0_i32_0, %c0_i32_1 : i32, i32, i32
  }
  func.func @transform_4(%arg0: i32) -> (i32, i32) {
    %c0_i32 = arith.constant 0 : i32
    %c0_i32_0 = arith.constant 0 : i32
    %c0_i32_1 = arith.constant 0 : i32
    return %c0_i32, %c0_i32_0 : i32, i32
  }
  func.func @transform_5(%arg0: i32) -> (i32, i32, i32) {
    %c0_i32 = arith.constant 0 : i32
    %c0_i32_0 = arith.constant 0 : i32
    %c0_i32_1 = arith.constant 0 : i32
    return %arg0, %c0_i32, %c0_i32_0 : i32, i32, i32
  }
}

module attributes {stable_mosaic.version = 11 : i64} {
  func.func @_fc_kernel(%arg0: memref<2x128xf32, #tpu.memory_space<vmem>>, %arg1: memref<128x32xf32, #tpu.memory_space<vmem>>, %arg2: memref<1x32xf32, #tpu.memory_space<vmem>>, %arg3: memref<2x32xf32, #tpu.memory_space<vmem>>) attributes {dimension_semantics = [], scalar_prefetch = 0 : i64, scratch_operands = 0 : i64, tpu.core_type = #tpu.core_type<tc>} {
    %c0 = arith.constant 0 : index
    %c0_0 = arith.constant 0 : index
    %0 = vector.load %arg0[%c0, %c0_0] : memref<2x128xf32, #tpu.memory_space<vmem>>, vector<2x128xf32>
    %c0_1 = arith.constant 0 : index
    %c0_2 = arith.constant 0 : index
    %1 = vector.load %arg1[%c0_1, %c0_2] : memref<128x32xf32, #tpu.memory_space<vmem>>, vector<128x32xf32>
    %cst = arith.constant dense<0.000000e+00> : vector<2x32xf32>
    %2 = tpu.matmul %0, %1, %cst {dimension_numbers = #tpu.dot_dimension_numbers<[1], [0], [0], [1], [0, 0, 1, 1], [], []>} : vector<2x128xf32>, vector<128x32xf32>, vector<2x32xf32> -> vector<2x32xf32>
    %c0_3 = arith.constant 0 : index
    %c0_4 = arith.constant 0 : index
    %3 = vector.load %arg2[%c0_3, %c0_4] : memref<1x32xf32, #tpu.memory_space<vmem>>, vector<1x32xf32>
    %4 = vector.broadcast %3 : vector<1x32xf32> to vector<2x32xf32>
    %5 = arith.addf %2, %4 : vector<2x32xf32>
    %c0_5 = arith.constant 0 : index
    %c0_6 = arith.constant 0 : index
    %6 = vector.load %arg3[%c0_5, %c0_6] : memref<2x32xf32, #tpu.memory_space<vmem>>, vector<2x32xf32>
    tpu.vector_store %arg3[%c0_5, %c0_6], %5 {strides = array<i32>} : memref<2x32xf32, #tpu.memory_space<vmem>>, vector<2x32xf32>,
    return
  }
}

</mosaic_0001>

<llo_original>
// kernel: encoder_cnn_forward.3
$region0: #{encoder_cnn_forward.3}
  #allocation0 [shape = 'u32[]', space=smem, size = 0x4, offset = 0x4, fixed_abs, tag = 'smem constant byte address 0x4 - core index']
  #allocation1 [shape = 'u32[144,128]{1,0:T(1,128)}', space=vmem, size = 0x12000, scoped, tag = 'internal scratch']
  %s0 = inlined_call_operand.vmem [shape: f32[2,128], index: 0, kind: input, shape index: {}]
  %s1 = inlined_call_operand.vmem [shape: f32[128,32], index: 1, kind: input, shape index: {}]
  %s2 = inlined_call_operand.vmem [shape: f32[1,32], index: 2, kind: input, shape index: {}]
  %s3 = inlined_call_operand.hbm [shape: f32[2,32], index: 3, kind: output, shape index: {}]
  %s4 = sld [smem:[#allocation0]]
  $region22: #{encoder_cnn_forward.3} parent=0
    _
  %s6 = ssub.s32 1, %s4
  %s7 = scalar_select 0, %s6, %s4
  $region1: #{encoder_cnn_forward.3} parent=0
    #allocation2 [shape = 'u8[1024]{0}', space=vmem, size = 0x400, scoped, tag = 'output window, operand 0, single buffered']
    #allocation3 [shape = 's32[1]{0}', space=sflag, size = 0x4, scoped, tag = 'scoped memory for encoder_cnn_forward.3']
    %8 = vsyncpa [#allocation3], 0
    // Predicated region
    $region2: #{encoder_cnn_forward.3} parent=1 // pred_check
      _
    $region3: #{encoder_cnn_forward.3} parent=1 // pred_check_branch
      %10 = sbr.rel (0) target = $region5
    $region4: #{encoder_cnn_forward.3} parent=1 // pred_region
      _
    $region5: #{encoder_cnn_forward.3} parent=1 // pred_fallthru
      _
    // Predicated region
    $region6: #{encoder_cnn_forward.3} parent=1 // pred_check
      _
    $region7: #{encoder_cnn_forward.3} parent=1 // pred_check_branch
      %12 = sbr.rel (0) target = $region9
    $region8: #{encoder_cnn_forward.3} parent=1 // pred_region
      _
    $region9: #{encoder_cnn_forward.3} parent=1 // pred_fallthru
      _
    // Predicated region
    $region10: #{encoder_cnn_forward.3} parent=1 // pred_check
      _
    $region11: #{encoder_cnn_forward.3} parent=1 // pred_check_branch
      %14 = sbr.rel (0) target = $region13
    $region12: #{encoder_cnn_forward.3} parent=1 // pred_region
      _
    $region13: #{encoder_cnn_forward.3} parent=1 // pred_fallthru
      _
    %v15 = vld [vmem:[%s0] sm:$0x3]
    %v16 = vld [vmem:[%s1] sm:$0xff]
    %v17 = vld [vmem:[%s1 + $0x8] sm:$0xff]
    %v18 = vld [vmem:[%s1 + $0x10] sm:$0xff]
    %v19 = vld [vmem:[%s1 + $0x18] sm:$0xff]
    %v20 = vld [vmem:[%s1 + $0x20] sm:$0xff]
    %v21 = vld [vmem:[%s1 + $0x28] sm:$0xff]
    %v22 = vld [vmem:[%s1 + $0x30] sm:$0xff]
    %v23 = vld [vmem:[%s1 + $0x38] sm:$0xff]
    %v24 = vld [vmem:[%s1 + $0x40] sm:$0xff]
    %v25 = vld [vmem:[%s1 + $0x48] sm:$0xff]
    %v26 = vld [vmem:[%s1 + $0x50] sm:$0xff]
    %v27 = vld [vmem:[%s1 + $0x58] sm:$0xff]
    %v28 = vld [vmem:[%s1 + $0x60] sm:$0xff]
    %v29 = vld [vmem:[%s1 + $0x68] sm:$0xff]
    %v30 = vld [vmem:[%s1 + $0x70] sm:$0xff]
    %v31 = vld [vmem:[%s1 + $0x78] sm:$0xff]
    %v32 = vld [vmem:[%s2] sm:$0x1]
    %v34 = vlaneseq
    %v35 = vshrl.u32 %v34, 7
    %v36 = vsub.s32 0, %v35
    %v37 = vrot.slane %v32, %v36
    %39 = vmatprep.subr.mxu0 0.0
    %40 = vmatpush1.msra.mxu0 %v16
    %41 = vmatprep.subr.mxu0 0.0
    %42 = vmatpush1.msra.mxu0 %v17
    %43 = vmatprep.subr.mxu0 0.0
    %44 = vmatpush1.msra.mxu0 %v18
    %45 = vmatprep.subr.mxu0 0.0
    %46 = vmatpush1.msra.mxu0 %v19
    %47 = vmatprep.subr.mxu0 0.0
    %48 = vmatpush1.msra.mxu0 %v20
    %49 = vmatprep.subr.mxu0 0.0
    %50 = vmatpush1.msra.mxu0 %v21
    %51 = vmatprep.subr.mxu0 0.0
    %52 = vmatpush1.msra.mxu0 %v22
    %53 = vmatprep.subr.mxu0 0.0
    %54 = vmatpush1.msra.mxu0 %v23
    %55 = vmatprep.subr.mxu0 0.0
    %56 = vmatpush1.msra.mxu0 %v24
    %57 = vmatprep.subr.mxu0 0.0
    %58 = vmatpush1.msra.mxu0 %v25
    %59 = vmatprep.subr.mxu0 0.0
    %60 = vmatpush1.msra.mxu0 %v26
    %61 = vmatprep.subr.mxu0 0.0
    %62 = vmatpush1.msra.mxu0 %v27
    %63 = vmatprep.subr.mxu0 0.0
    %64 = vmatpush1.msra.mxu0 %v28
    %65 = vmatprep.subr.mxu0 0.0
    %66 = vmatpush1.msra.mxu0 %v29
    %67 = vmatprep.subr.mxu0 0.0
    %68 = vmatpush1.msra.mxu0 %v30
    %69 = vmatprep.subr.mxu0 0.0
    %70 = vmatpush1.msra.mxu0 %v31
    %71 = vmatprep.subr.mxu0 0.0
    %72 = vmatpush1.msra.mxu0 0.0
    %73 = vmatprep.subr.mxu0 0.0
    %74 = vmatpush1.msra.mxu0 0.0
    %75 = vmatprep.subr.mxu0 0.0
    %76 = vmatpush1.msra.mxu0 0.0
    %77 = vmatprep.subr.mxu0 0.0
    %78 = vmatpush1.msra.mxu0 0.0
    %79 = vmatprep.subr.mxu0 0.0
    %80 = vmatpush1.msra.mxu0 0.0
    %81 = vmatprep.subr.mxu0 0.0
    %82 = vmatpush1.msra.mxu0 0.0
    %83 = vmatprep.subr.mxu0 0.0
    %84 = vmatpush1.msra.mxu0 0.0
    %85 = vmatprep.subr.mxu0 0.0
    %86 = vmatpush1.msra.mxu0 0.0
    %87 = vmatprep.subr.mxu0 0.0
    %88 = vmatpush1.msra.mxu0 0.0
    %89 = vmatprep.subr.mxu0 0.0
    %90 = vmatpush1.msra.mxu0 0.0
    %91 = vmatprep.subr.mxu0 0.0
    %92 = vmatpush1.msra.mxu0 0.0
    %93 = vmatprep.subr.mxu0 0.0
    %94 = vmatpush1.msra.mxu0 0.0
    %95 = vmatprep.subr.mxu0 0.0
    %96 = vmatpush1.msra.mxu0 0.0
    %97 = vmatprep.subr.mxu0 0.0
    %98 = vmatpush1.msra.mxu0 0.0
    %99 = vmatprep.subr.mxu0 0.0
    %100 = vmatpush1.msra.mxu0 0.0
    %101 = vmatprep.subr.mxu0 0.0
    %102 = vmatpush1.msra.mxu0 0.0
    %103 = vmatprep.mubr.f32.mxu0 0.0
    %104 = vmatmul.mubr.f32.gmra.mrb[0].mxu0 %v15
    %v105 = vpop.f32.mrb[0].mxu0
    %v106 = vadd.f32 %v37, %v105
    %v107 = vpop.f32.mrb[0].mxu0
    %108 = vdwg.mxu0
    %vm109 = vcmask 254976
    %110 = vst.msk [vmem:[#allocation2] sm:$0x3] %vm109, %v106
    // Predicated region
    $region14: #{encoder_cnn_forward.3} parent=1 // pred_check
      _
    $region15: #{encoder_cnn_forward.3} parent=1 // pred_check_branch
      %112 = sbr.rel (0) target = $region17
    $region16: #{encoder_cnn_forward.3} parent=1 // pred_region
      %s114 = ssub.s32 32, 32
      %115 = vsyncadd [#allocation3], %s114
      %s117 = sshll.u32 [#allocation2], 4
      %s118 = int_to_ptr.vmem [resolvable:$true] %s117
      %120 = dma.vmem_to_hbm [thread:$0]  %s118, 32, %s3, [#allocation3]
    $region17: #{encoder_cnn_forward.3} parent=1 // pred_fallthru
      _
    // Predicated region
    $region18: #{encoder_cnn_forward.3} parent=1 // pred_check
      _
    $region19: #{encoder_cnn_forward.3} parent=1 // pred_check_branch
      %122 = sbr.rel (0) target = $region21
    $region20: #{encoder_cnn_forward.3} parent=1 // pred_region
      %123 = dma.done [#allocation3], 32
    $region21: #{encoder_cnn_forward.3} parent=1 // pred_fallthru
      _
    %124 = vsyncpa [#allocation3], 1

// kernel: encoder_cnn_forward.2
$region0: #{encoder_cnn_forward.2}
  #allocation0 [shape = 'u32[]', space=smem, size = 0x4, offset = 0x4, fixed_abs, tag = 'smem constant byte address 0x4 - core index']
  #allocation1 [shape = 'u32[144,128]{1,0:T(1,128)}', space=vmem, size = 0x12000, scoped, tag = 'internal scratch']
  #allocation2 [shape = 'bf16[80,32]{1,0:T(16,128)(2,1)}', space=vmem, size = 0x5000, scoped, tag = 'scratch operand']
  %s0 = inlined_call_operand.vmem [shape: bf16[2,96,16], index: 0, kind: input, shape index: {}]
  %s1 = inlined_call_operand.vmem [shape: bf16[4,16,32], index: 1, kind: input, shape index: {}]
  %s2 = inlined_call_operand.vmem [shape: f32[1,32], index: 2, kind: input, shape index: {}]
  %s3 = inlined_call_operand.vmem [shape: bf16[9,32,128], index: 3, kind: input, shape index: {}]
  %s4 = inlined_call_operand.vmem [shape: f32[1,128], index: 4, kind: input, shape index: {}]
  %s5 = inlined_call_operand.vmem [shape: f32[2,1,128], index: 5, kind: output, shape index: {}]
  %s6 = sld [smem:[#allocation0]]
  $region53: #{encoder_cnn_forward.2} parent=0
    _
  %s8 = ssub.s32 1, %s6
  %s9 = scalar_select 0, %s8, %s6
  loop: start=0, step=1, limit=4
  $region2: #{encoder_cnn_forward.2} parent=0 // loop_pre_header
    _
  $region3: #{encoder_cnn_forward.2} parent=0 // loop_header
    %s11 = sphi 0, %s15
    %p12 = scmp.ge.s32.totalorder %s11, 4
    %s21 = sphi 0, %s23
    %s24 = sphi 0, %s21
    %s25 = sphi 0, %s24
    %s41 = sphi 0, %s25
    %s45 = sphi 0, %s45
    %s47 = sphi 0, %s45
    %s48 = sphi 0, %s47
    %s62 = sphi 0, %s48
    %s66 = sphi 0, %s66
    %s68 = sphi 0, %s66
    %s69 = sphi 0, %s68
    %s83 = sphi 0, %s69
    %s87 = sphi 0, %s87
    %s89 = sphi 0, %s87
    %s90 = sphi 0, %s89
    %s104 = sphi 0, %s90
    %s108 = sphi 0, %s108
    %s110 = sphi 0, %s108
    %s111 = sphi 0, %s110
    %s125 = sphi 0, %s111
    %s131 = sphi 0, %s133
    %s134 = sphi 0, %s131
    %s135 = sphi 0, %s134
    %s151 = sphi 0, %s135
  $region4: #{encoder_cnn_forward.2} parent=0 // loop_header_branch
    %14 = sbr.rel (%p12) target = $region8
  $region5: #{encoder_cnn_forward.2} parent=0 // loop_body
    %s16 = ssub.s32 %s11, 1
    %s17 = ssub.s32 %s11, 2
    %s18 = sadd.s32 %s11, 1
    %s19 = ssub.s32 %s11, %s18
    %p20 = scmp.eq.s32.totalorder %s19, 0
    %s22 = sadd.s32 %s21, 1
    %s23 = scalar_select %p20, %s21, %s22
    %p26 = pneg %p20
    %p27 = scmp.eq.s32.totalorder %s11, 1
    %p28 = por %p26, %p27
    %p29 = scmp.ne.s32.totalorder %s21, %s24
    %p30 = scmp.eq.s32.totalorder %s11, 0
    %p31 = por %p29, %p30
    %p32 = scmp.ne.s32.totalorder %s21, %s24
    %p33 = scmp.eq.s32.totalorder %s16, 1
    %p34 = por %p32, %p33
    %p35 = scmp.ne.s32.totalorder %s24, %s25
    %p36 = scmp.eq.s32.totalorder %s16, 0
    %p37 = por %p35, %p36
    %p38 = scmp.ne.s32.totalorder %s24, %s25
    %p39 = scmp.eq.s32.totalorder %s17, 1
    %p40 = por %p38, %p39
    %p42 = scmp.ne.s32.totalorder %s25, %s41
    %p43 = scmp.eq.s32.totalorder %s17, 0
    %p44 = por %p42, %p43
    %s46 = sadd.s32 %s45, 1
    %p49 = scmp.eq.s32.totalorder %s11, 1
    %p50 = scmp.ne.s32.totalorder %s45, %s47
    %p51 = scmp.eq.s32.totalorder %s11, 0
    %p52 = por %p50, %p51
    %p53 = scmp.ne.s32.totalorder %s45, %s47
    %p54 = scmp.eq.s32.totalorder %s16, 1
    %p55 = por %p53, %p54
    %p56 = scmp.ne.s32.totalorder %s47, %s48
    %p57 = scmp.eq.s32.totalorder %s16, 0
    %p58 = por %p56, %p57
    %p59 = scmp.ne.s32.totalorder %s47, %s48
    %p60 = scmp.eq.s32.totalorder %s17, 1
    %p61 = por %p59, %p60
    %p63 = scmp.ne.s32.totalorder %s48, %s62
    %p64 = scmp.eq.s32.totalorder %s17, 0
    %p65 = por %p63, %p64
    %s67 = sadd.s32 %s66, 1
    %p70 = scmp.eq.s32.totalorder %s11, 1
    %p71 = scmp.ne.s32.totalorder %s66, %s68
    %p72 = scmp.eq.s32.totalorder %s11, 0
    %p73 = por %p71, %p72
    %p74 = scmp.ne.s32.totalorder %s66, %s68
    %p75 = scmp.eq.s32.totalorder %s16, 1
    %p76 = por %p74, %p75
    %p77 = scmp.ne.s32.totalorder %s68, %s69
    %p78 = scmp.eq.s32.totalorder %s16, 0
    %p79 = por %p77, %p78
    %p80 = scmp.ne.s32.totalorder %s68, %s69
    %p81 = scmp.eq.s32.totalorder %s17, 1
    %p82 = por %p80, %p81
    %p84 = scmp.ne.s32.totalorder %s69, %s83
    %p85 = scmp.eq.s32.totalorder %s17, 0
    %p86 = por %p84, %p85
    %s88 = sadd.s32 %s87, 1
    %p91 = scmp.eq.s32.totalorder %s11, 1
    %p92 = scmp.ne.s32.totalorder %s87, %s89
    %p93 = scmp.eq.s32.totalorder %s11, 0
    %p94 = por %p92, %p93
    %p95 = scmp.ne.s32.totalorder %s87, %s89
    %p96 = scmp.eq.s32.totalorder %s16, 1
    %p97 = por %p95, %p96
    %p98 = scmp.ne.s32.totalorder %s89, %s90
    %p99 = scmp.eq.s32.totalorder %s16, 0
    %p100 = por %p98, %p99
    %p101 = scmp.ne.s32.totalorder %s89, %s90
    %p102 = scmp.eq.s32.totalorder %s17, 1
    %p103 = por %p101, %p102
    %p105 = scmp.ne.s32.totalorder %s90, %s104
    %p106 = scmp.eq.s32.totalorder %s17, 0
    %p107 = por %p105, %p106
    %s109 = sadd.s32 %s108, 1
    %p112 = scmp.eq.s32.totalorder %s11, 1
    %p113 = scmp.ne.s32.totalorder %s108, %s110
    %p114 = scmp.eq.s32.totalorder %s11, 0
    %p115 = por %p113, %p114
    %p116 = scmp.ne.s32.totalorder %s108, %s110
    %p117 = scmp.eq.s32.totalorder %s16, 1
    %p118 = por %p116, %p117
    %p119 = scmp.ne.s32.totalorder %s110, %s111
    %p120 = scmp.eq.s32.totalorder %s16, 0
    %p121 = por %p119, %p120
    %p122 = scmp.ne.s32.totalorder %s110, %s111
    %p123 = scmp.eq.s32.totalorder %s17, 1
    %p124 = por %p122, %p123
    %p126 = scmp.ne.s32.totalorder %s111, %s125
    %p127 = scmp.eq.s32.totalorder %s17, 0
    %p128 = por %p126, %p127
    %s129 = ssub.s32 %s11, %s18
    %p130 = scmp.eq.s32.totalorder %s129, 0
    %s132 = sadd.s32 %s131, 1
    %s133 = scalar_select %p130, %s131, %s132
    %p136 = pneg %p130
    %p137 = scmp.eq.s32.totalorder %s11, 1
    %p138 = por %p136, %p137
    %p139 = scmp.ne.s32.totalorder %s131, %s134
    %p140 = scmp.eq.s32.totalorder %s11, 0
    %p141 = por %p139, %p140
    %p142 = scmp.ne.s32.totalorder %s131, %s134
    %p143 = scmp.eq.s32.totalorder %s16, 1
    %p144 = por %p142, %p143
    %p145 = scmp.ne.s32.totalorder %s134, %s135
    %p146 = scmp.eq.s32.totalorder %s16, 0
    %p147 = por %p145, %p146
    %p148 = scmp.ne.s32.totalorder %s134, %s135
    %p149 = scmp.eq.s32.totalorder %s17, 1
    %p150 = por %p148, %p149
    %p152 = scmp.ne.s32.totalorder %s135, %s151
    %p153 = scmp.eq.s32.totalorder %s17, 0
    %p154 = por %p152, %p153
    %p155 = scmp.le.s32.totalorder 1, %s11
    %p156 = scmp.lt.s32.totalorder %s11, 3
    %p157 = pnand %p155, %p156
    %p158 = pneg %p157
    // Predicated region
    $region9: #{encoder_cnn_forward.2} parent=5 // pred_check
      _
    $region10: #{encoder_cnn_forward.2} parent=5 // pred_check_branch
      %160 = sbr.rel (%p157) target = $region12
    $region11: #{encoder_cnn_forward.2} parent=5 // pred_region
      %s161 = ssub.s32 %s11, 1
      // Predicated region
      $region13: #{encoder_cnn_forward.2} parent=11 // pred_check
        %p162 = pneg %p58
      $region14: #{encoder_cnn_forward.2} parent=11 // pred_check_branch
        %164 = sbr.rel (%p162) target = $region16
      $region15: #{encoder_cnn_forward.2} parent=11 // pred_region
        _
      $region16: #{encoder_cnn_forward.2} parent=11 // pred_fallthru
        _
      // Predicated region
      $region17: #{encoder_cnn_forward.2} parent=11 // pred_check
        %p165 = pneg %p79
      $region18: #{encoder_cnn_forward.2} parent=11 // pred_check_branch
        %167 = sbr.rel (%p165) target = $region20
      $region19: #{encoder_cnn_forward.2} parent=11 // pred_region
        _
      $region20: #{encoder_cnn_forward.2} parent=11 // pred_fallthru
        _
      // Predicated region
      $region21: #{encoder_cnn_forward.2} parent=11 // pred_check
        %p168 = pneg %p100
      $region22: #{encoder_cnn_forward.2} parent=11 // pred_check_branch
        %170 = sbr.rel (%p168) target = $region24
      $region23: #{encoder_cnn_forward.2} parent=11 // pred_region
        _
      $region24: #{encoder_cnn_forward.2} parent=11 // pred_fallthru
        _
      // Predicated region
      $region25: #{encoder_cnn_forward.2} parent=11 // pred_check
        %p171 = pneg %p121
      $region26: #{encoder_cnn_forward.2} parent=11 // pred_check_branch
        %173 = sbr.rel (%p171) target = $region28
      $region27: #{encoder_cnn_forward.2} parent=11 // pred_region
        _
      $region28: #{encoder_cnn_forward.2} parent=11 // pred_fallthru
        _
    $region12: #{encoder_cnn_forward.2} parent=5 // pred_fallthru
      _
    %p174 = scmp.lt.s32.totalorder %s11, 2
    // Predicated region
    $region29: #{encoder_cnn_forward.2} parent=5 // pred_check
      %p175 = pneg %p174
    $region30: #{encoder_cnn_forward.2} parent=5 // pred_check_branch
      %177 = sbr.rel (%p175) target = $region32
    $region31: #{encoder_cnn_forward.2} parent=5 // pred_region
      // Predicated region
      $region33: #{encoder_cnn_forward.2} parent=31 // pred_check
        %p178 = pneg %p31
      $region34: #{encoder_cnn_forward.2} parent=31 // pred_check_branch
        %180 = sbr.rel (%p178) target = $region36
      $region35: #{encoder_cnn_forward.2} parent=31 // pred_region
        %p181 = scmp.lt.s32.totalorder %s11, 1
        %s182 = scalar_select %p181, %s11, 1
        %s183 = smul.addr %s182, 12
        %s184 = smul.addr %s183, 4
        %s185 = scalar_lea.vmem %s0, %s184
      $region36: #{encoder_cnn_forward.2} parent=31 // pred_fallthru
        _
    $region32: #{encoder_cnn_forward.2} parent=5 // pred_fallthru
      _
    %p186 = scmp.le.s32.totalorder 1, %s11
    %p187 = scmp.lt.s32.totalorder %s11, 3
    %p188 = pnand %p186, %p187
    %p189 = pneg %p188
    // Predicated region
    $region37: #{encoder_cnn_forward.2} parent=5 // pred_check
      _
    $region38: #{encoder_cnn_forward.2} parent=5 // pred_check_branch
      %191 = sbr.rel (%p188) target = $region40
    $region39: #{encoder_cnn_forward.2} parent=5 // pred_region
      %s192 = ssub.s32 %s11, 1
      %p193 = scmp.lt.s32.totalorder %s16, 1
      %s194 = scalar_select %p193, %s16, 1
      %s195 = smul.addr %s194, 12
      %s196 = smul.addr %s195, 4
      %s197 = scalar_lea.vmem %s0, %s196
      %p198 = pneg %p37
      %p199 = pneg %p34
      %p200 = pneg %p58
      %p201 = pneg %p55
      %p202 = pneg %p79
      %p203 = pneg %p76
      %p204 = pneg %p100
      %p205 = pneg %p97
      %p206 = pneg %p121
      %p207 = pneg %p118
      %p208 = pneg %p147
      %p209 = pneg %p144
      %p210 = scmp.lt.s32.totalorder %s16, 1
      %s211 = scalar_select %p210, %s16, 1
      %s212 = scalar_lea.vmem %s5, %s211
      %p213 = scmp.lt.s32.totalorder %s16, 1
      %s214 = scalar_select %p213, %s16, 1
      %s215 = smul.addr %s214, 12
      %s216 = smul.addr %s215, 4
      %s217 = scalar_lea.vmem %s0, %s216
      %p218 = scmp.lt.s32.totalorder %s16, 1
      %s219 = scalar_select %p218, %s16, 1
      %s220 = scalar_lea.vmem %s5, %s219
      %v222 = vld [vmem:[%s217] sm:$0xf]
      %v223 = vld [vmem:[%s217 + $0x4] sm:$0xf]
      %v224 = vld [vmem:[%s217 + $0x8] sm:$0xf]
      %v225 = vld [vmem:[%s217 + $0xc] sm:$0xf]
      %v226 = vld [vmem:[%s217 + $0x10] sm:$0xf]
      %v227 = vld [vmem:[%s217 + $0x14] sm:$0xf]
      %v228 = vld [vmem:[%s217 + $0x18] sm:$0xf]
      %v229 = vld [vmem:[%s217 + $0x1c] sm:$0xf]
      %v230 = vld [vmem:[%s217 + $0x20] sm:$0xf]
      %v231 = vld [vmem:[%s217 + $0x24] sm:$0xf]
      %v232 = vld [vmem:[%s1] sm:$0xf]
      %v233 = vld [vmem:[%s1 + $0x4] sm:$0xf]
      %v234 = vld [vmem:[%s217 + $0x28] sm:$0x1]
      %s235 = scalar_lea.vmem %s1, 8
      %v236 = vld [vmem:[%s235] sm:$0xf]
      %v237 = vld [vmem:[%s235 + $0x4] sm:$0xf]
      %v249 = vunpack.c.l.b16 %v222
      %v250 = vunpack.c.l.b16 %v223
      %v251 = vunpack.c.l.b16 %v224
      %v252 = vunpack.c.l.b16 %v225
      %v253 = vunpack.c.l.b16 %v226
      %v254 = vunpack.c.l.b16 %v227
      %v255 = vunpack.c.l.b16 %v228
      %v256 = vunpack.c.l.b16 %v229
      %v257 = vunpack.c.l.b16 %v230
      %v258 = vunpack.c.l.b16 %v231
      %v259 = vunpack.c.l.b16 %v234
      %v260 = vpack.c.b16 %v250, %v249
      %v261 = vpack.c.b16 %v252, %v251
      %v262 = vpack.c.b16 %v254, %v253
      %v263 = vpack.c.b16 %v256, %v255
      %v264 = vpack.c.b16 %v258, %v257
      %v265 = vpack.c.b16 %v259, %v259
      %vm266 = vsmask.f32 7424
      %v268 = vshrl.u32 %v260, 16
      %v270 = vshll.u32 %v260, 16
      %v272 = vrot.slane %v270, 1
      %v273 = vor.u32 %v268, %v272
      %v275 = vshll.u32 %v261, 16
      %v277 = vrot.slane %v275, 1
      %v278 = vsel %vm266, %v273, %v277
      %v279 = vshrl.u32 %v261, 16
      %v281 = vor.u32 %v279, %v277
      %v283 = vshll.u32 %v262, 16
      %v285 = vrot.slane %v283, 1
      %v286 = vsel %vm266, %v281, %v285
      %v287 = vshrl.u32 %v262, 16
      %v289 = vor.u32 %v287, %v285
      %v291 = vshll.u32 %v263, 16
      %v293 = vrot.slane %v291, 1
      %v294 = vsel %vm266, %v289, %v293
      %v295 = vshrl.u32 %v263, 16
      %v297 = vor.u32 %v295, %v293
      %v299 = vshll.u32 %v264, 16
      %v301 = vrot.slane %v299, 1
      %v302 = vsel %vm266, %v297, %v301
      %v303 = vshrl.u32 %v264, 16
      %v305 = vor.u32 %v303, %v301
      %v307 = vshll.u32 %v265, 16
      %v309 = vrot.slane %v307, 1
      %v310 = vsel %vm266, %v305, %v309
      %v313 = vunpack.c.l.b16 %v236
      %v314 = vunpack.c.l.b16 %v237
      %v315 = vpack.c.b16 %v314, %v313
      %vm317 = vcmask 130048
      %v319 = vsel %vm317, %v278, 0
      %v322 = vsel %vm317, %v286, 0
      %v325 = vsel %vm317, %v294, 0
      %v328 = vsel %vm317, %v302, 0
      %v331 = vsel %vm317, %v310, 0
      %333 = vmatprep.subr.bf16.mxu0 0
      %334 = vmatpush1.bf16.msra.mxu0 %v315
      %335 = vmatprep.subr.bf16.mxu0 0
      %336 = vmatpush1.bf16.msra.mxu0 0
      %337 = vmatprep.subr.bf16.mxu0 0
      %338 = vmatpush1.bf16.msra.mxu0 0
      %339 = vmatprep.subr.bf16.mxu0 0
      %340 = vmatpush1.bf16.msra.mxu0 0
      %341 = vmatprep.subr.bf16.mxu0 0
      %342 = vmatpush1.bf16.msra.mxu0 0
      %343 = vmatprep.subr.bf16.mxu0 0
      %344 = vmatpush1.bf16.msra.mxu0 0
      %345 = vmatprep.subr.bf16.mxu0 0
      %346 = vmatpush1.bf16.msra.mxu0 0
      %347 = vmatprep.subr.bf16.mxu0 0
      %348 = vmatpush1.bf16.msra.mxu0 0
      %349 = vmatprep.subr.bf16.mxu0 0
      %350 = vmatpush1.bf16.msra.mxu0 0
      %351 = vmatprep.subr.bf16.mxu0 0
      %352 = vmatpush1.bf16.msra.mxu0 0
      %353 = vmatprep.subr.bf16.mxu0 0
      %354 = vmatpush1.bf16.msra.mxu0 0
      %355 = vmatprep.subr.bf16.mxu0 0
      %356 = vmatpush1.bf16.msra.mxu0 0
      %357 = vmatprep.subr.bf16.mxu0 0
      %358 = vmatpush1.bf16.msra.mxu0 0
      %359 = vmatprep.subr.bf16.mxu0 0
      %360 = vmatpush1.bf16.msra.mxu0 0
      %361 = vmatprep.subr.bf16.mxu0 0
      %362 = vmatpush1.bf16.msra.mxu0 0
      %363 = vmatprep.subr.bf16.mxu0 0
      %364 = vmatpush1.bf16.msra.mxu0 0
      %365 = vmatprep.mubr.bf16.mxu0 0
      %366 = vmatmul.mubr.bf16.gmra.mrb[0].mxu0 %v319
      %v367 = vpop.f32.mrb[0].mxu0
      %v368 = vadd.f32 0.0, %v367
      %v369 = vpop.f32.mrb[0].mxu0
      %v370 = vpop.f32.mrb[0].mxu0
      %v371 = vadd.f32 0.0, %v370
      %v372 = vpop.f32.mrb[0].mxu0
      %373 = vmatprep.mubr.bf16.mxu0 0
      %374 = vmatmul.mubr.bf16.gmra.mrb[0].mxu0 %v322
      %v375 = vpop.f32.mrb[0].mxu0
      %v376 = vadd.f32 0.0, %v375
      %v377 = vpop.f32.mrb[0].mxu0
      %v378 = vpop.f32.mrb[0].mxu0
      %v379 = vadd.f32 0.0, %v378
      %v380 = vpop.f32.mrb[0].mxu0
      %381 = vmatprep.mubr.bf16.mxu0 0
      %382 = vmatmul.mubr.bf16.gmra.mrb[0].mxu0 %v325
      %v383 = vpop.f32.mrb[0].mxu0
      %v384 = vadd.f32 0.0, %v383
      %v385 = vpop.f32.mrb[0].mxu0
      %v386 = vpop.f32.mrb[0].mxu0
      %v387 = vadd.f32 0.0, %v386
      %v388 = vpop.f32.mrb[0].mxu0
      %389 = vmatprep.mubr.bf16.mxu0 0
      %390 = vmatmul.mubr.bf16.gmra.mrb[0].mxu0 %v328
      %v391 = vpop.f32.mrb[0].mxu0
      %v392 = vadd.f32 0.0, %v391
      %v393 = vpop.f32.mrb[0].mxu0
      %v394 = vpop.f32.mrb[0].mxu0
      %v395 = vadd.f32 0.0, %v394
      %v396 = vpop.f32.mrb[0].mxu0
      %397 = vmatprep.mubr.bf16.mxu0 0
      %398 = vmatmul.mubr.bf16.gmra.mrb[0].mxu0 %v331
      %v399 = vpop.f32.mrb[0].mxu0
      %v400 = vadd.f32 0.0, %v399
      %v401 = vpop.f32.mrb[0].mxu0
      %v402 = vpop.f32.mrb[0].mxu0
      %v403 = vadd.f32 0.0, %v402
      %v404 = vpop.f32.mrb[0].mxu0
      %405 = vdwg.mxu0
      %v408 = vunpack.c.l.b16 %v232
      %v409 = vunpack.c.l.b16 %v233
      %v410 = vpack.c.b16 %v409, %v408
      %v412 = vsel %vm317, %v260, 0
      %v414 = vsel %vm317, %v261, 0
      %v416 = vsel %vm317, %v262, 0
      %v418 = vsel %vm317, %v263, 0
      %v420 = vsel %vm317, %v264, 0
      %422 = vmatprep.subr.bf16.mxu0 0
      %423 = vmatpush1.bf16.msra.mxu0 %v410
      %424 = vmatprep.subr.bf16.mxu0 0
      %425 = vmatpush1.bf16.msra.mxu0 0
      %426 = vmatprep.subr.bf16.mxu0 0
      %427 = vmatpush1.bf16.msra.mxu0 0
      %428 = vmatprep.subr.bf16.mxu0 0
      %429 = vmatpush1.bf16.msra.mxu0 0
      %430 = vmatprep.subr.bf16.mxu0 0
      %431 = vmatpush1.bf16.msra.mxu0 0
      %432 = vmatprep.subr.bf16.mxu0 0
      %433 = vmatpush1.bf16.msra.mxu0 0
      %434 = vmatprep.subr.bf16.mxu0 0
      %435 = vmatpush1.bf16.msra.mxu0 0
      %436 = vmatprep.subr.bf16.mxu0 0
      %437 = vmatpush1.bf16.msra.mxu0 0
      %438 = vmatprep.subr.bf16.mxu0 0
      %439 = vmatpush1.bf16.msra.mxu0 0
      %440 = vmatprep.subr.bf16.mxu0 0
      %441 = vmatpush1.bf16.msra.mxu0 0
      %442 = vmatprep.subr.bf16.mxu0 0
      %443 = vmatpush1.bf16.msra.mxu0 0
      %444 = vmatprep.subr.bf16.mxu0 0
      %445 = vmatpush1.bf16.msra.mxu0 0
      %446 = vmatprep.subr.bf16.mxu0 0
      %447 = vmatpush1.bf16.msra.mxu0 0
      %448 = vmatprep.subr.bf16.mxu0 0
      %449 = vmatpush1.bf16.msra.mxu0 0
      %450 = vmatprep.subr.bf16.mxu0 0
      %451 = vmatpush1.bf16.msra.mxu0 0
      %452 = vmatprep.subr.bf16.mxu0 0
      %453 = vmatpush1.bf16.msra.mxu0 0
      %454 = vmatprep.mubr.bf16.mxu0 0
      %455 = vmatmul.mubr.bf16.gmra.mrb[0].mxu0 %v412
      %v456 = vpop.f32.mrb[0].mxu0
      %v457 = vadd.f32 %v368, %v456
      %v458 = vpop.f32.mrb[0].mxu0
      %v459 = vpop.f32.mrb[0].mxu0
      %v460 = vadd.f32 %v371, %v459
      %v461 = vpop.f32.mrb[0].mxu0
      %462 = vmatprep.mubr.bf16.mxu0 0
      %463 = vmatmul.mubr.bf16.gmra.mrb[0].mxu0 %v414
      %v464 = vpop.f32.mrb[0].mxu0
      %v465 = vadd.f32 %v376, %v464
      %v466 = vpop.f32.mrb[0].mxu0
      %v467 = vpop.f32.mrb[0].mxu0
      %v468 = vadd.f32 %v379, %v467
      %v469 = vpop.f32.mrb[0].mxu0
      %470 = vmatprep.mubr.bf16.mxu0 0
      %471 = vmatmul.mubr.bf16.gmra.mrb[0].mxu0 %v416
      %v472 = vpop.f32.mrb[0].mxu0
      %v473 = vadd.f32 %v384, %v472
      %v474 = vpop.f32.mrb[0].mxu0
      %v475 = vpop.f32.mrb[0].mxu0
      %v476 = vadd.f32 %v387, %v475
      %v477 = vpop.f32.mrb[0].mxu0
      %478 = vmatprep.mubr.bf16.mxu0 0
      %479 = vmatmul.mubr.bf16.gmra.mrb[0].mxu0 %v418
      %v480 = vpop.f32.mrb[0].mxu0
      %v481 = vadd.f32 %v392, %v480
      %v482 = vpop.f32.mrb[0].mxu0
      %v483 = vpop.f32.mrb[0].mxu0
      %v484 = vadd.f32 %v395, %v483
      %v485 = vpop.f32.mrb[0].mxu0
      %486 = vmatprep.mubr.bf16.mxu0 0
      %487 = vmatmul.mubr.bf16.gmra.mrb[0].mxu0 %v420
      %v488 = vpop.f32.mrb[0].mxu0
      %v489 = vadd.f32 %v400, %v488
      %v490 = vpop.f32.mrb[0].mxu0
      %v491 = vpop.f32.mrb[0].mxu0
      %v492 = vadd.f32 %v403, %v491
      %v493 = vpop.f32.mrb[0].mxu0
      %494 = vdwg.mxu0
      %v495 = vld [vmem:[%s217 + $0x28] sm:$0xf]
      %s496 = scalar_lea.vmem %s1, 16
      %v497 = vld [vmem:[%s496] sm:$0xf]
      %v498 = vld [vmem:[%s496 + $0x4] sm:$0xf]
      %v500 = vunpack.c.l.b16 %v495
      %v501 = vpack.c.b16 %v251, %v250
      %v502 = vpack.c.b16 %v253, %v252
      %v503 = vpack.c.b16 %v255, %v254
      %v504 = vpack.c.b16 %v257, %v256
      %v505 = vpack.c.b16 %v500, %v258
      %v508 = vunpack.c.l.b16 %v497
      %v509 = vunpack.c.l.b16 %v498
      %v510 = vpack.c.b16 %v509, %v508
      %v513 = vsel %vm317, %v501, 0
      %v516 = vsel %vm317, %v502, 0
      %v519 = vsel %vm317, %v503, 0
      %v522 = vsel %vm317, %v504, 0
      %v525 = vsel %vm317, %v505, 0
      %527 = vmatprep.subr.bf16.mxu0 0
      %528 = vmatpush1.bf16.msra.mxu0 %v510
      %529 = vmatprep.subr.bf16.mxu0 0
      %530 = vmatpush1.bf16.msra.mxu0 0
      %531 = vmatprep.subr.bf16.mxu0 0
      %532 = vmatpush1.bf16.msra.mxu0 0
      %533 = vmatprep.subr.bf16.mxu0 0
      %534 = vmatpush1.bf16.msra.mxu0 0
      %535 = vmatprep.subr.bf16.mxu0 0
      %536 = vmatpush1.bf16.msra.mxu0 0
      %537 = vmatprep.subr.bf16.mxu0 0
      %538 = vmatpush1.bf16.msra.mxu0 0
      %539 = vmatprep.subr.bf16.mxu0 0
      %540 = vmatpush1.bf16.msra.mxu0 0
      %541 = vmatprep.subr.bf16.mxu0 0
      %542 = vmatpush1.bf16.msra.mxu0 0
      %543 = vmatprep.subr.bf16.mxu0 0
      %544 = vmatpush1.bf16.msra.mxu0 0
      %545 = vmatprep.subr.bf16.mxu0 0
      %546 = vmatpush1.bf16.msra.mxu0 0
      %547 = vmatprep.subr.bf16.mxu0 0
      %548 = vmatpush1.bf16.msra.mxu0 0
      %549 = vmatprep.subr.bf16.mxu0 0
      %550 = vmatpush1.bf16.msra.mxu0 0
      %551 = vmatprep.subr.bf16.mxu0 0
      %552 = vmatpush1.bf16.msra.mxu0 0
      %553 = vmatprep.subr.bf16.mxu0 0
      %554 = vmatpush1.bf16.msra.mxu0 0
      %555 = vmatprep.subr.bf16.mxu0 0
      %556 = vmatpush1.bf16.msra.mxu0 0
      %557 = vmatprep.subr.bf16.mxu0 0
      %558 = vmatpush1.bf16.msra.mxu0 0
      %559 = vmatprep.mubr.bf16.mxu0 0
      %560 = vmatmul.mubr.bf16.gmra.mrb[0].mxu0 %v513
      %v561 = vpop.f32.mrb[0].mxu0
      %v562 = vadd.f32 0.0, %v561
      %v563 = vpop.f32.mrb[0].mxu0
      %v564 = vpop.f32.mrb[0].mxu0
      %v565 = vadd.f32 0.0, %v564
      %v566 = vpop.f32.mrb[0].mxu0
      %567 = vmatprep.mubr.bf16.mxu0 0
      %568 = vmatmul.mubr.bf16.gmra.mrb[0].mxu0 %v516
      %v569 = vpop.f32.mrb[0].mxu0
      %v570 = vadd.f32 0.0, %v569
      %v571 = vpop.f32.mrb[0].mxu0
      %v572 = vpop.f32.mrb[0].mxu0
      %v573 = vadd.f32 0.0, %v572
      %v574 = vpop.f32.mrb[0].mxu0
      %575 = vmatprep.mubr.bf16.mxu0 0
      %576 = vmatmul.mubr.bf16.gmra.mrb[0].mxu0 %v519
      %v577 = vpop.f32.mrb[0].mxu0
      %v578 = vadd.f32 0.0, %v577
      %v579 = vpop.f32.mrb[0].mxu0
      %v580 = vpop.f32.mrb[0].mxu0
      %v581 = vadd.f32 0.0, %v580
      %v582 = vpop.f32.mrb[0].mxu0
      %583 = vmatprep.mubr.bf16.mxu0 0
      %584 = vmatmul.mubr.bf16.gmra.mrb[0].mxu0 %v522
      %v585 = vpop.f32.mrb[0].mxu0
      %v586 = vadd.f32 0.0, %v585
      %v587 = vpop.f32.mrb[0].mxu0
      %v588 = vpop.f32.mrb[0].mxu0
      %v589 = vadd.f32 0.0, %v588
      %v590 = vpop.f32.mrb[0].mxu0
      %591 = vmatprep.mubr.bf16.mxu0 0
      %592 = vmatmul.mubr.bf16.gmra.mrb[0].mxu0 %v525
      %v593 = vpop.f32.mrb[0].mxu0
      %v594 = vadd.f32 0.0, %v593
      %v595 = vpop.f32.mrb[0].mxu0
      %v596 = vpop.f32.mrb[0].mxu0
      %v597 = vadd.f32 0.0, %v596
      %v598 = vpop.f32.mrb[0].mxu0
      %599 = vdwg.mxu0
      %v600 = vadd.f32 %v457, %v562
      %v601 = vadd.f32 %v460, %v565
      %v602 = vadd.f32 %v465, %v570
      %v603 = vadd.f32 %v468, %v573
      %v604 = vadd.f32 %v473, %v578
      %v605 = vadd.f32 %v476, %v581
      %v606 = vadd.f32 %v481, %v586
      %v607 = vadd.f32 %v484, %v589
      %v608 = vadd.f32 %v489, %v594
      %v609 = vadd.f32 %v492, %v597
      %v610 = vld [vmem:[%s217 + $0x4] sm:$0xf]
      %v611 = vld [vmem:[%s217 + $0x8] sm:$0xf]
      %v612 = vld [vmem:[%s217 + $0xc] sm:$0xf]
      %v613 = vld [vmem:[%s217 + $0x10] sm:$0xf]
      %v614 = vld [vmem:[%s217 + $0x14] sm:$0xf]
      %v615 = vld [vmem:[%s217 + $0x18] sm:$0xf]
      %v616 = vld [vmem:[%s217 + $0x1c] sm:$0xf]
      %v617 = vld [vmem:[%s217 + $0x20] sm:$0xf]
      %v618 = vld [vmem:[%s217 + $0x24] sm:$0xf]
      %v619 = vld [vmem:[%s217 + $0x28] sm:$0xf]
      %v620 = vld [vmem:[%s217 + $0x2c] sm:$0x1]
      %s621 = scalar_lea.vmem %s1, 24
      %v622 = vld [vmem:[%s621] sm:$0xf]
      %v623 = vld [vmem:[%s621 + $0x4] sm:$0xf]
      %v635 = vunpack.c.l.b16 %v610
      %v636 = vunpack.c.l.b16 %v611
      %v637 = vunpack.c.l.b16 %v612
      %v638 = vunpack.c.l.b16 %v613
      %v639 = vunpack.c.l.b16 %v614
      %v640 = vunpack.c.l.b16 %v615
      %v641 = vunpack.c.l.b16 %v616
      %v642 = vunpack.c.l.b16 %v617
      %v643 = vunpack.c.l.b16 %v618
      %v644 = vunpack.c.l.b16 %v619
      %v645 = vunpack.c.l.b16 %v620
      %v646 = vpack.c.b16 %v636, %v635
      %v647 = vpack.c.b16 %v638, %v637
      %v648 = vpack.c.b16 %v640, %v639
      %v649 = vpack.c.b16 %v642, %v641
      %v650 = vpack.c.b16 %v644, %v643
      %v651 = vpack.c.b16 %v645, %v645
      %v653 = vshrl.u32 %v646, 16
      %v655 = vshll.u32 %v646, 16
      %v657 = vrot.slane %v655, 1
      %v658 = vor.u32 %v653, %v657
      %v660 = vshll.u32 %v647, 16
      %v662 = vrot.slane %v660, 1
      %v663 = vsel %vm266, %v658, %v662
      %v664 = vshrl.u32 %v647, 16
      %v666 = vor.u32 %v664, %v662
      %v668 = vshll.u32 %v648, 16
      %v670 = vrot.slane %v668, 1
      %v671 = vsel %vm266, %v666, %v670
      %v672 = vshrl.u32 %v648, 16
      %v674 = vor.u32 %v672, %v670
      %v676 = vshll.u32 %v649, 16
      %v678 = vrot.slane %v676, 1
      %v679 = vsel %vm266, %v674, %v678
      %v680 = vshrl.u32 %v649, 16
      %v682 = vor.u32 %v680, %v678
      %v684 = vshll.u32 %v650, 16
      %v686 = vrot.slane %v684, 1
      %v687 = vsel %vm266, %v682, %v686
      %v688 = vshrl.u32 %v650, 16
      %v690 = vor.u32 %v688, %v686
      %v692 = vshll.u32 %v651, 16
      %v694 = vrot.slane %v692, 1
      %v695 = vsel %vm266, %v690, %v694
      %v698 = vunpack.c.l.b16 %v622
      %v699 = vunpack.c.l.b16 %v623
      %v700 = vpack.c.b16 %v699, %v698
      %v703 = vsel %vm317, %v663, 0
      %v706 = vsel %vm317, %v671, 0
      %v709 = vsel %vm317, %v679, 0
      %v712 = vsel %vm317, %v687, 0
      %v715 = vsel %vm317, %v695, 0
      %717 = vmatprep.subr.bf16.mxu0 0
      %718 = vmatpush1.bf16.msra.mxu0 %v700
      %719 = vmatprep.subr.bf16.mxu0 0
      %720 = vmatpush1.bf16.msra.mxu0 0
      %721 = vmatprep.subr.bf16.mxu0 0
      %722 = vmatpush1.bf16.msra.mxu0 0
      %723 = vmatprep.subr.bf16.mxu0 0
      %724 = vmatpush1.bf16.msra.mxu0 0
      %725 = vmatprep.subr.bf16.mxu0 0
      %726 = vmatpush1.bf16.msra.mxu0 0
      %727 = vmatprep.subr.bf16.mxu0 0
      %728 = vmatpush1.bf16.msra.mxu0 0
      %729 = vmatprep.subr.bf16.mxu0 0
      %730 = vmatpush1.bf16.msra.mxu0 0
      %731 = vmatprep.subr.bf16.mxu0 0
      %732 = vmatpush1.bf16.msra.mxu0 0
      %733 = vmatprep.subr.bf16.mxu0 0
      %734 = vmatpush1.bf16.msra.mxu0 0
      %735 = vmatprep.subr.bf16.mxu0 0
      %736 = vmatpush1.bf16.msra.mxu0 0
      %737 = vmatprep.subr.bf16.mxu0 0
      %738 = vmatpush1.bf16.msra.mxu0 0
      %739 = vmatprep.subr.bf16.mxu0 0
      %740 = vmatpush1.bf16.msra.mxu0 0
      %741 = vmatprep.subr.bf16.mxu0 0
      %742 = vmatpush1.bf16.msra.mxu0 0
      %743 = vmatprep.subr.bf16.mxu0 0
      %744 = vmatpush1.bf16.msra.mxu0 0
      %745 = vmatprep.subr.bf16.mxu0 0
      %746 = vmatpush1.bf16.msra.mxu0 0
      %747 = vmatprep.subr.bf16.mxu0 0
      %748 = vmatpush1.bf16.msra.mxu0 0
      %749 = vmatprep.mubr.bf16.mxu0 0
      %750 = vmatmul.mubr.bf16.gmra.mrb[0].mxu0 %v703
      %v751 = vpop.f32.mrb[0].mxu0
      %v752 = vadd.f32 0.0, %v751
      %v753 = vpop.f32.mrb[0].mxu0
      %v754 = vpop.f32.mrb[0].mxu0
      %v755 = vadd.f32 0.0, %v754
      %v756 = vpop.f32.mrb[0].mxu0
      %757 = vmatprep.mubr.bf16.mxu0 0
      %758 = vmatmul.mubr.bf16.gmra.mrb[0].mxu0 %v706
      %v759 = vpop.f32.mrb[0].mxu0
      %v760 = vadd.f32 0.0, %v759
      %v761 = vpop.f32.mrb[0].mxu0
      %v762 = vpop.f32.mrb[0].mxu0
      %v763 = vadd.f32 0.0, %v762
      %v764 = vpop.f32.mrb[0].mxu0
      %765 = vmatprep.mubr.bf16.mxu0 0
      %766 = vmatmul.mubr.bf16.gmra.mrb[0].mxu0 %v709
      %v767 = vpop.f32.mrb[0].mxu0
      %v768 = vadd.f32 0.0, %v767
      %v769 = vpop.f32.mrb[0].mxu0
      %v770 = vpop.f32.mrb[0].mxu0
      %v771 = vadd.f32 0.0, %v770
      %v772 = vpop.f32.mrb[0].mxu0
      %773 = vmatprep.mubr.bf16.mxu0 0
      %774 = vmatmul.mubr.bf16.gmra.mrb[0].mxu0 %v712
      %v775 = vpop.f32.mrb[0].mxu0
      %v776 = vadd.f32 0.0, %v775
      %v777 = vpop.f32.mrb[0].mxu0
      %v778 = vpop.f32.mrb[0].mxu0
      %v779 = vadd.f32 0.0, %v778
      %v780 = vpop.f32.mrb[0].mxu0
      %781 = vmatprep.mubr.bf16.mxu0 0
      %782 = vmatmul.mubr.bf16.gmra.mrb[0].mxu0 %v715
      %v783 = vpop.f32.mrb[0].mxu0
      %v784 = vadd.f32 0.0, %v783
      %v785 = vpop.f32.mrb[0].mxu0
      %v786 = vpop.f32.mrb[0].mxu0
      %v787 = vadd.f32 0.0, %v786
      %v788 = vpop.f32.mrb[0].mxu0
      %789 = vdwg.mxu0
      %v790 = vadd.f32 %v600, %v752
      %v791 = vadd.f32 %v601, %v755
      %v792 = vadd.f32 %v602, %v760
      %v793 = vadd.f32 %v603, %v763
      %v794 = vadd.f32 %v604, %v768
      %v795 = vadd.f32 %v605, %v771
      %v796 = vadd.f32 %v606, %v776
      %v797 = vadd.f32 %v607, %v779
      %v798 = vadd.f32 %v608, %v784
      %v799 = vadd.f32 %v609, %v787
      %v800 = vld [vmem:[%s2] sm:$0x1]
      %v802 = vlaneseq
      %v803 = vshrl.u32 %v802, 7
      %v804 = vsub.s32 0, %v803
      %v805 = vrot.slane %v800, %v804
      %v807 = vadd.f32 %v790, %v805
      %v808 = vadd.f32 %v791, %v805
      %v809 = vadd.f32 %v792, %v805
      %v810 = vadd.f32 %v793, %v805
      %v811 = vadd.f32 %v794, %v805
      %v812 = vadd.f32 %v795, %v805
      %v813 = vadd.f32 %v796, %v805
      %v814 = vadd.f32 %v797, %v805
      %v815 = vadd.f32 %v798, %v805
      %v816 = vadd.f32 %v799, %v805
      %v817 = vmax.f32 %v807, 0.0
      %v818 = vmax.f32 %v808, 0.0
      %v819 = vmax.f32 %v809, 0.0
      %v820 = vmax.f32 %v810, 0.0
      %v821 = vmax.f32 %v811, 0.0
      %v822 = vmax.f32 %v812, 0.0
      %v823 = vmax.f32 %v813, 0.0
      %v824 = vmax.f32 %v814, 0.0
      %v825 = vmax.f32 %v815, 0.0
      %v826 = vmax.f32 %v816, 0.0
      %v827 = vpack.c.bf16 %v818, %v817
      %v828 = vpack.c.bf16 %v820, %v819
      %v829 = vpack.c.bf16 %v822, %v821
      %v830 = vpack.c.bf16 %v824, %v823
      %v831 = vpack.c.bf16 %v826, %v825
      %vm832 = vcmask 261120
      %833 = vst.msk [vmem:[#allocation2] sm:$0xff] %vm832, %v827
      %834 = vst.msk [vmem:[#allocation2 + $0x8] sm:$0xff] %vm832, %v828
      %835 = vst.msk [vmem:[#allocation2 + $0x10] sm:$0xff] %vm832, %v829
      %836 = vst.msk [vmem:[#allocation2 + $0x18] sm:$0xff] %vm832, %v830
      %837 = vst.msk [vmem:[#allocation2 + $0x20] sm:$0xff] %vm832, %v831
      %v838 = vld [vmem:[#allocation2] sm:$0xff]
      %v839 = vld [vmem:[#allocation2 + $0x8] sm:$0xff]
      %v840 = vld [vmem:[#allocation2 + $0x10] sm:$0xff]
      %v841 = vld [vmem:[%s3] sm:$0xf]
      %v842 = vld [vmem:[%s3 + $0x4] sm:$0xf]
      %v843 = vld [vmem:[%s3 + $0x8] sm:$0xf]
      %v844 = vld [vmem:[%s3 + $0xc] sm:$0xf]
      %v845 = vld [vmem:[#allocation2 + $0x18] sm:$0x1]
      %s846 = scalar_lea.vmem %s3, 16
      %v847 = vld [vmem:[%s846] sm:$0xf]
      %v848 = vld [vmem:[%s846 + $0x4] sm:$0xf]
      %v849 = vld [vmem:[%s846 + $0x8] sm:$0xf]
      %v850 = vld [vmem:[%s846 + $0xc] sm:$0xf]
      %v852 = vshrl.u32 %v838, 16
      %v854 = vshll.u32 %v838, 16
      %v856 = vrot.slane %v854, 1
      %v857 = vor.u32 %v852, %v856
      %v859 = vshll.u32 %v839, 16
      %v861 = vrot.slane %v859, 1
      %v862 = vsel %vm266, %v857, %v861
      %v863 = vshrl.u32 %v839, 16
      %v865 = vor.u32 %v863, %v861
      %v867 = vshll.u32 %v840, 16
      %v869 = vrot.slane %v867, 1
      %v870 = vsel %vm266, %v865, %v869
      %v871 = vshrl.u32 %v840, 16
      %v873 = vor.u32 %v871, %v869
      %v875 = vshll.u32 %v845, 16
      %v877 = vrot.slane %v875, 1
      %v878 = vsel %vm266, %v873, %v877
      %v883 = vunpack.c.l.b16 %v847
      %v884 = vunpack.c.l.b16 %v848
      %v885 = vunpack.c.l.b16 %v849
      %v886 = vunpack.c.l.b16 %v850
      %v887 = vpack.c.b16 %v884, %v883
      %v888 = vpack.c.b16 %v886, %v885
      %v892 = vsel %vm832, %v862, 0
      %v895 = vsel %vm832, %v870, 0
      %v898 = vsel %vm832, %v878, 0
      %900 = vmatprep.subr.bf16.mxu0 0
      %901 = vmatpush1.bf16.msra.mxu0 %v887
      %902 = vmatprep.subr.bf16.mxu0 0
      %903 = vmatpush1.bf16.msra.mxu0 %v888
      %904 = vmatprep.subr.bf16.mxu0 0
      %905 = vmatpush1.bf16.msra.mxu0 0
      %906 = vmatprep.subr.bf16.mxu0 0
      %907 = vmatpush1.bf16.msra.mxu0 0
      %908 = vmatprep.subr.bf16.mxu0 0
      %909 = vmatpush1.bf16.msra.mxu0 0
      %910 = vmatprep.subr.bf16.mxu0 0
      %911 = vmatpush1.bf16.msra.mxu0 0
      %912 = vmatprep.subr.bf16.mxu0 0
      %913 = vmatpush1.bf16.msra.mxu0 0
      %914 = vmatprep.subr.bf16.mxu0 0
      %915 = vmatpush1.bf16.msra.mxu0 0
      %916 = vmatprep.subr.bf16.mxu0 0
      %917 = vmatpush1.bf16.msra.mxu0 0
      %918 = vmatprep.subr.bf16.mxu0 0
      %919 = vmatpush1.bf16.msra.mxu0 0
      %920 = vmatprep.subr.bf16.mxu0 0
      %921 = vmatpush1.bf16.msra.mxu0 0
      %922 = vmatprep.subr.bf16.mxu0 0
      %923 = vmatpush1.bf16.msra.mxu0 0
      %924 = vmatprep.subr.bf16.mxu0 0
      %925 = vmatpush1.bf16.msra.mxu0 0
      %926 = vmatprep.subr.bf16.mxu0 0
      %927 = vmatpush1.bf16.msra.mxu0 0
      %928 = vmatprep.subr.bf16.mxu0 0
      %929 = vmatpush1.bf16.msra.mxu0 0
      %930 = vmatprep.subr.bf16.mxu0 0
      %931 = vmatpush1.bf16.msra.mxu0 0
      %932 = vmatprep.mubr.bf16.mxu0 0
      %933 = vmatmul.mubr.bf16.gmra.mrb[0].mxu0 %v892
      %v934 = vpop.f32.mrb[0].mxu0
      %v935 = vadd.f32 0.0, %v934
      %v936 = vpop.f32.mrb[0].mxu0
      %v937 = vpop.f32.mrb[0].mxu0
      %v938 = vadd.f32 0.0, %v937
      %v939 = vpop.f32.mrb[0].mxu0
      %940 = vmatprep.mubr.bf16.mxu0 0
      %941 = vmatmul.mubr.bf16.gmra.mrb[0].mxu0 %v895
      %v942 = vpop.f32.mrb[0].mxu0
      %v943 = vadd.f32 0.0, %v942
      %v944 = vpop.f32.mrb[0].mxu0
      %v945 = vpop.f32.mrb[0].mxu0
      %v946 = vadd.f32 0.0, %v945
      %v947 = vpop.f32.mrb[0].mxu0
      %948 = vmatprep.mubr.bf16.mxu0 0
      %949 = vmatmul.mubr.bf16.gmra.mrb[0].mxu0 %v898
      %v950 = vpop.f32.mrb[0].mxu0
      %v951 = vadd.f32 0.0, %v950
      %v952 = vpop.f32.mrb[0].mxu0
      %v953 = vpop.f32.mrb[0].mxu0
      %v954 = vadd.f32 0.0, %v953
      %v955 = vpop.f32.mrb[0].mxu0
      %956 = vdwg.mxu0
      %v961 = vunpack.c.l.b16 %v841
      %v962 = vunpack.c.l.b16 %v842
      %v963 = vunpack.c.l.b16 %v843
      %v964 = vunpack.c.l.b16 %v844
      %v965 = vpack.c.b16 %v962, %v961
      %v966 = vpack.c.b16 %v964, %v963
      %v969 = vsel %vm832, %v838, 0
      %v971 = vsel %vm832, %v839, 0
      %v973 = vsel %vm832, %v840, 0
      %975 = vmatprep.subr.bf16.mxu0 0
      %976 = vmatpush1.bf16.msra.mxu0 %v965
      %977 = vmatprep.subr.bf16.mxu0 0
      %978 = vmatpush1.bf16.msra.mxu0 %v966
      %979 = vmatprep.subr.bf16.mxu0 0
      %980 = vmatpush1.bf16.msra.mxu0 0
      %981 = vmatprep.subr.bf16.mxu0 0
      %982 = vmatpush1.bf16.msra.mxu0 0
      %983 = vmatprep.subr.bf16.mxu0 0
      %984 = vmatpush1.bf16.msra.mxu0 0
      %985 = vmatprep.subr.bf16.mxu0 0
      %986 = vmatpush1.bf16.msra.mxu0 0
      %987 = vmatprep.subr.bf16.mxu0 0
      %988 = vmatpush1.bf16.msra.mxu0 0
      %989 = vmatprep.subr.bf16.mxu0 0
      %990 = vmatpush1.bf16.msra.mxu0 0
      %991 = vmatprep.subr.bf16.mxu0 0
      %992 = vmatpush1.bf16.msra.mxu0 0
      %993 = vmatprep.subr.bf16.mxu0 0
      %994 = vmatpush1.bf16.msra.mxu0 0
      %995 = vmatprep.subr.bf16.mxu0 0
      %996 = vmatpush1.bf16.msra.mxu0 0
      %997 = vmatprep.subr.bf16.mxu0 0
      %998 = vmatpush1.bf16.msra.mxu0 0
      %999 = vmatprep.subr.bf16.mxu0 0
      %1000 = vmatpush1.bf16.msra.mxu0 0
      %1001 = vmatprep.subr.bf16.mxu0 0
      %1002 = vmatpush1.bf16.msra.mxu0 0
      %1003 = vmatprep.subr.bf16.mxu0 0
      %1004 = vmatpush1.bf16.msra.mxu0 0
      %1005 = vmatprep.subr.bf16.mxu0 0
      %1006 = vmatpush1.bf16.msra.mxu0 0
      %1007 = vmatprep.mubr.bf16.mxu0 0
      %1008 = vmatmul.mubr.bf16.gmra.mrb[0].mxu0 %v969
      %v1009 = vpop.f32.mrb[0].mxu0
      %v1010 = vadd.f32 %v935, %v1009
      %v1011 = vpop.f32.mrb[0].mxu0
      %v1012 = vpop.f32.mrb[0].mxu0
      %v1013 = vadd.f32 %v938, %v1012
      %v1014 = vpop.f32.mrb[0].mxu0
      %1015 = vmatprep.mubr.bf16.mxu0 0
      %1016 = vmatmul.mubr.bf16.gmra.mrb[0].mxu0 %v971
      %v1017 = vpop.f32.mrb[0].mxu0
      %v1018 = vadd.f32 %v943, %v1017
      %v1019 = vpop.f32.mrb[0].mxu0
      %v1020 = vpop.f32.mrb[0].mxu0
      %v1021 = vadd.f32 %v946, %v1020
      %v1022 = vpop.f32.mrb[0].mxu0
      %1023 = vmatprep.mubr.bf16.mxu0 0
      %1024 = vmatmul.mubr.bf16.gmra.mrb[0].mxu0 %v973
      %v1025 = vpop.f32.mrb[0].mxu0
      %v1026 = vadd.f32 %v951, %v1025
      %v1027 = vpop.f32.mrb[0].mxu0
      %v1028 = vpop.f32.mrb[0].mxu0
      %v1029 = vadd.f32 %v954, %v1028
      %v1030 = vpop.f32.mrb[0].mxu0
      %1031 = vdwg.mxu0
      %v1032 = vld [vmem:[#allocation2] sm:$0xfe]
      %s1033 = scalar_lea.vmem %s3, 32
      %v1034 = vld [vmem:[%s1033] sm:$0xf]
      %v1035 = vld [vmem:[%s1033 + $0x4] sm:$0xf]
      %v1036 = vld [vmem:[%s1033 + $0x8] sm:$0xf]
      %v1037 = vld [vmem:[%s1033 + $0xc] sm:$0xf]
      %vm1042 = vcmask 1046528
      %v1043 = vrot.slane %v1032, 1
      %v1044 = vrot.slane %v839, 1
      %v1045 = vsel %vm1042, %v1043, %v1044
      %v1046 = vrot.slane %v840, 1
      %v1047 = vsel %vm1042, %v1044, %v1046
      %v1048 = vrot.slane %v845, 1
      %v1049 = vsel %vm1042, %v1046, %v1048
      %v1054 = vunpack.c.l.b16 %v1034
      %v1055 = vunpack.c.l.b16 %v1035
      %v1056 = vunpack.c.l.b16 %v1036
      %v1057 = vunpack.c.l.b16 %v1037
      %v1058 = vpack.c.b16 %v1055, %v1054
      %v1059 = vpack.c.b16 %v1057, %v1056
      %v1063 = vsel %vm832, %v1045, 0
      %v1066 = vsel %vm832, %v1047, 0
      %v1069 = vsel %vm832, %v1049, 0
      %1071 = vmatprep.subr.bf16.mxu0 0
      %1072 = vmatpush1.bf16.msra.mxu0 %v1058
      %1073 = vmatprep.subr.bf16.mxu0 0
      %1074 = vmatpush1.bf16.msra.mxu0 %v1059
      %1075 = vmatprep.subr.bf16.mxu0 0
      %1076 = vmatpush1.bf16.msra.mxu0 0
      %1077 = vmatprep.subr.bf16.mxu0 0
      %1078 = vmatpush1.bf16.msra.mxu0 0
      %1079 = vmatprep.subr.bf16.mxu0 0
      %1080 = vmatpush1.bf16.msra.mxu0 0
      %1081 = vmatprep.subr.bf16.mxu0 0
      %1082 = vmatpush1.bf16.msra.mxu0 0
      %1083 = vmatprep.subr.bf16.mxu0 0
      %1084 = vmatpush1.bf16.msra.mxu0 0
      %1085 = vmatprep.subr.bf16.mxu0 0
      %1086 = vmatpush1.bf16.msra.mxu0 0
      %1087 = vmatprep.subr.bf16.mxu0 0
      %1088 = vmatpush1.bf16.msra.mxu0 0
      %1089 = vmatprep.subr.bf16.mxu0 0
      %1090 = vmatpush1.bf16.msra.mxu0 0
      %1091 = vmatprep.subr.bf16.mxu0 0
      %1092 = vmatpush1.bf16.msra.mxu0 0
      %1093 = vmatprep.subr.bf16.mxu0 0
      %1094 = vmatpush1.bf16.msra.mxu0 0
      %1095 = vmatprep.subr.bf16.mxu0 0
      %1096 = vmatpush1.bf16.msra.mxu0 0
      %1097 = vmatprep.subr.bf16.mxu0 0
      %1098 = vmatpush1.bf16.msra.mxu0 0
      %1099 = vmatprep.subr.bf16.mxu0 0
      %1100 = vmatpush1.bf16.msra.mxu0 0
      %1101 = vmatprep.subr.bf16.mxu0 0
      %1102 = vmatpush1.bf16.msra.mxu0 0
      %1103 = vmatprep.mubr.bf16.mxu0 0
      %1104 = vmatmul.mubr.bf16.gmra.mrb[0].mxu0 %v1063
      %v1105 = vpop.f32.mrb[0].mxu0
      %v1106 = vadd.f32 0.0, %v1105
      %v1107 = vpop.f32.mrb[0].mxu0
      %v1108 = vpop.f32.mrb[0].mxu0
      %v1109 = vadd.f32 0.0, %v1108
      %v1110 = vpop.f32.mrb[0].mxu0
      %1111 = vmatprep.mubr.bf16.mxu0 0
      %1112 = vmatmul.mubr.bf16.gmra.mrb[0].mxu0 %v1066
      %v1113 = vpop.f32.mrb[0].mxu0
      %v1114 = vadd.f32 0.0, %v1113
      %v1115 = vpop.f32.mrb[0].mxu0
      %v1116 = vpop.f32.mrb[0].mxu0
      %v1117 = vadd.f32 0.0, %v1116
      %v1118 = vpop.f32.mrb[0].mxu0
      %1119 = vmatprep.mubr.bf16.mxu0 0
      %1120 = vmatmul.mubr.bf16.gmra.mrb[0].mxu0 %v1069
      %v1121 = vpop.f32.mrb[0].mxu0
      %v1122 = vadd.f32 0.0, %v1121
      %v1123 = vpop.f32.mrb[0].mxu0
      %v1124 = vpop.f32.mrb[0].mxu0
      %v1125 = vadd.f32 0.0, %v1124
      %v1126 = vpop.f32.mrb[0].mxu0
      %1127 = vdwg.mxu0
      %v1128 = vadd.f32 %v1010, %v1106
      %v1129 = vadd.f32 %v1013, %v1109
      %v1130 = vadd.f32 %v1018, %v1114
      %v1131 = vadd.f32 %v1021, %v1117
      %v1132 = vadd.f32 %v1026, %v1122
      %v1133 = vadd.f32 %v1029, %v1125
      %v1134 = vld [vmem:[#allocation2] sm:$0xf0]
      %v1135 = vld [vmem:[#allocation2 + $0x18] sm:$0xf]
      %s1136 = scalar_lea.vmem %s3, 48
      %v1137 = vld [vmem:[%s1136] sm:$0xf]
      %v1138 = vld [vmem:[%s1136 + $0x4] sm:$0xf]
      %v1139 = vld [vmem:[%s1136 + $0x8] sm:$0xf]
      %v1140 = vld [vmem:[%s1136 + $0xc] sm:$0xf]
      %vm1143 = vcmask 1043456
      %v1144 = vrot.slane %v1134, 4
      %v1145 = vrot.slane %v839, 4
      %v1146 = vsel %vm1143, %v1144, %v1145
      %v1147 = vrot.slane %v840, 4
      %v1148 = vsel %vm1143, %v1145, %v1147
      %v1149 = vrot.slane %v1135, 4
      %v1150 = vsel %vm1143, %v1147, %v1149
      %v1155 = vunpack.c.l.b16 %v1137
      %v1156 = vunpack.c.l.b16 %v1138
      %v1157 = vunpack.c.l.b16 %v1139
      %v1158 = vunpack.c.l.b16 %v1140
      %v1159 = vpack.c.b16 %v1156, %v1155
      %v1160 = vpack.c.b16 %v1158, %v1157
      %v1164 = vsel %vm832, %v1146, 0
      %v1167 = vsel %vm832, %v1148, 0
      %v1170 = vsel %vm832, %v1150, 0
      %1172 = vmatprep.subr.bf16.mxu0 0
      %1173 = vmatpush1.bf16.msra.mxu0 %v1159
      %1174 = vmatprep.subr.bf16.mxu0 0
      %1175 = vmatpush1.bf16.msra.mxu0 %v1160
      %1176 = vmatprep.subr.bf16.mxu0 0
      %1177 = vmatpush1.bf16.msra.mxu0 0
      %1178 = vmatprep.subr.bf16.mxu0 0
      %1179 = vmatpush1.bf16.msra.mxu0 0
      %1180 = vmatprep.subr.bf16.mxu0 0
      %1181 = vmatpush1.bf16.msra.mxu0 0
      %1182 = vmatprep.subr.bf16.mxu0 0
      %1183 = vmatpush1.bf16.msra.mxu0 0
      %1184 = vmatprep.subr.bf16.mxu0 0
      %1185 = vmatpush1.bf16.msra.mxu0 0
      %1186 = vmatprep.subr.bf16.mxu0 0
      %1187 = vmatpush1.bf16.msra.mxu0 0
      %1188 = vmatprep.subr.bf16.mxu0 0
      %1189 = vmatpush1.bf16.msra.mxu0 0
      %1190 = vmatprep.subr.bf16.mxu0 0
      %1191 = vmatpush1.bf16.msra.mxu0 0
      %1192 = vmatprep.subr.bf16.mxu0 0
      %1193 = vmatpush1.bf16.msra.mxu0 0
      %1194 = vmatprep.subr.bf16.mxu0 0
      %1195 = vmatpush1.bf16.msra.mxu0 0
      %1196 = vmatprep.subr.bf16.mxu0 0
      %1197 = vmatpush1.bf16.msra.mxu0 0
      %1198 = vmatprep.subr.bf16.mxu0 0
      %1199 = vmatpush1.bf16.msra.mxu0 0
      %1200 = vmatprep.subr.bf16.mxu0 0
      %1201 = vmatpush1.bf16.msra.mxu0 0
      %1202 = vmatprep.subr.bf16.mxu0 0
      %1203 = vmatpush1.bf16.msra.mxu0 0
      %1204 = vmatprep.mubr.bf16.mxu0 0
      %1205 = vmatmul.mubr.bf16.gmra.mrb[0].mxu0 %v1164
      %v1206 = vpop.f32.mrb[0].mxu0
      %v1207 = vadd.f32 0.0, %v1206
      %v1208 = vpop.f32.mrb[0].mxu0
      %v1209 = vpop.f32.mrb[0].mxu0
      %v1210 = vadd.f32 0.0, %v1209
      %v1211 = vpop.f32.mrb[0].mxu0
      %1212 = vmatprep.mubr.bf16.mxu0 0
      %1213 = vmatmul.mubr.bf16.gmra.mrb[0].mxu0 %v1167
      %v1214 = vpop.f32.mrb[0].mxu0
      %v1215 = vadd.f32 0.0, %v1214
      %v1216 = vpop.f32.mrb[0].mxu0
      %v1217 = vpop.f32.mrb[0].mxu0
      %v1218 = vadd.f32 0.0, %v1217
      %v1219 = vpop.f32.mrb[0].mxu0
      %1220 = vmatprep.mubr.bf16.mxu0 0
      %1221 = vmatmul.mubr.bf16.gmra.mrb[0].mxu0 %v1170
      %v1222 = vpop.f32.mrb[0].mxu0
      %v1223 = vadd.f32 0.0, %v1222
      %v1224 = vpop.f32.mrb[0].mxu0
      %v1225 = vpop.f32.mrb[0].mxu0
      %v1226 = vadd.f32 0.0, %v1225
      %v1227 = vpop.f32.mrb[0].mxu0
      %1228 = vdwg.mxu0
      %v1229 = vadd.f32 %v1128, %v1207
      %v1230 = vadd.f32 %v1129, %v1210
      %v1231 = vadd.f32 %v1130, %v1215
      %v1232 = vadd.f32 %v1131, %v1218
      %v1233 = vadd.f32 %v1132, %v1223
      %v1234 = vadd.f32 %v1133, %v1226
      %v1235 = vld [vmem:[#allocation2 + $0x18] sm:$0x1f]
      %s1236 = scalar_lea.vmem %s3, 64
      %v1237 = vld [vmem:[%s1236] sm:$0xf]
      %v1238 = vld [vmem:[%s1236 + $0x4] sm:$0xf]
      %v1239 = vld [vmem:[%s1236 + $0x8] sm:$0xf]
      %v1240 = vld [vmem:[%s1236 + $0xc] sm:$0xf]
      %vm1241 = vsmask.f32 3328
      %v1243 = vshrl.u32 %v1134, 16
      %v1245 = vrot.slane %v1243, 4
      %v1246 = vshll.u32 %v1134, 16
      %v1248 = vrot.slane %v1246, 5
      %v1249 = vor.u32 %v1245, %v1248
      %v1250 = vrot.slane %v863, 4
      %v1251 = vrot.slane %v859, 5
      %v1252 = vor.u32 %v1250, %v1251
      %v1253 = vsel %vm1241, %v1249, %v1252
      %v1254 = vrot.slane %v871, 4
      %v1255 = vrot.slane %v867, 5
      %v1256 = vor.u32 %v1254, %v1255
      %v1257 = vsel %vm1241, %v1252, %v1256
      %v1259 = vshrl.u32 %v1235, 16
      %v1261 = vrot.slane %v1259, 4
      %v1262 = vshll.u32 %v1235, 16
      %v1264 = vrot.slane %v1262, 5
      %v1265 = vor.u32 %v1261, %v1264
      %v1266 = vsel %vm1241, %v1256, %v1265
      %v1271 = vunpack.c.l.b16 %v1237
      %v1272 = vunpack.c.l.b16 %v1238
      %v1273 = vunpack.c.l.b16 %v1239
      %v1274 = vunpack.c.l.b16 %v1240
      %v1275 = vpack.c.b16 %v1272, %v1271
      %v1276 = vpack.c.b16 %v1274, %v1273
      %v1280 = vsel %vm832, %v1253, 0
      %v1283 = vsel %vm832, %v1257, 0
      %v1286 = vsel %vm832, %v1266, 0
      %1288 = vmatprep.subr.bf16.mxu0 0
      %1289 = vmatpush1.bf16.msra.mxu0 %v1275
      %1290 = vmatprep.subr.bf16.mxu0 0
      %1291 = vmatpush1.bf16.msra.mxu0 %v1276
      %1292 = vmatprep.subr.bf16.mxu0 0
      %1293 = vmatpush1.bf16.msra.mxu0 0
      %1294 = vmatprep.subr.bf16.mxu0 0
      %1295 = vmatpush1.bf16.msra.mxu0 0
      %1296 = vmatprep.subr.bf16.mxu0 0
      %1297 = vmatpush1.bf16.msra.mxu0 0
      %1298 = vmatprep.subr.bf16.mxu0 0
      %1299 = vmatpush1.bf16.msra.mxu0 0
      %1300 = vmatprep.subr.bf16.mxu0 0
      %1301 = vmatpush1.bf16.msra.mxu0 0
      %1302 = vmatprep.subr.bf16.mxu0 0
      %1303 = vmatpush1.bf16.msra.mxu0 0
      %1304 = vmatprep.subr.bf16.mxu0 0
      %1305 = vmatpush1.bf16.msra.mxu0 0
      %1306 = vmatprep.subr.bf16.mxu0 0
      %1307 = vmatpush1.bf16.msra.mxu0 0
      %1308 = vmatprep.subr.bf16.mxu0 0
      %1309 = vmatpush1.bf16.msra.mxu0 0
      %1310 = vmatprep.subr.bf16.mxu0 0
      %1311 = vmatpush1.bf16.msra.mxu0 0
      %1312 = vmatprep.subr.bf16.mxu0 0
      %1313 = vmatpush1.bf16.msra.mxu0 0
      %1314 = vmatprep.subr.bf16.mxu0 0
      %1315 = vmatpush1.bf16.msra.mxu0 0
      %1316 = vmatprep.subr.bf16.mxu0 0
      %1317 = vmatpush1.bf16.msra.mxu0 0
      %1318 = vmatprep.subr.bf16.mxu0 0
      %1319 = vmatpush1.bf16.msra.mxu0 0
      %1320 = vmatprep.mubr.bf16.mxu0 0
      %1321 = vmatmul.mubr.bf16.gmra.mrb[0].mxu0 %v1280
      %v1322 = vpop.f32.mrb[0].mxu0
      %v1323 = vadd.f32 0.0, %v1322
      %v1324 = vpop.f32.mrb[0].mxu0
      %v1325 = vpop.f32.mrb[0].mxu0
      %v1326 = vadd.f32 0.0, %v1325
      %v1327 = vpop.f32.mrb[0].mxu0
      %1328 = vmatprep.mubr.bf16.mxu0 0
      %1329 = vmatmul.mubr.bf16.gmra.mrb[0].mxu0 %v1283
      %v1330 = vpop.f32.mrb[0].mxu0
      %v1331 = vadd.f32 0.0, %v1330
      %v1332 = vpop.f32.mrb[0].mxu0
      %v1333 = vpop.f32.mrb[0].mxu0
      %v1334 = vadd.f32 0.0, %v1333
      %v1335 = vpop.f32.mrb[0].mxu0
      %1336 = vmatprep.mubr.bf16.mxu0 0
      %1337 = vmatmul.mubr.bf16.gmra.mrb[0].mxu0 %v1286
      %v1338 = vpop.f32.mrb[0].mxu0
      %v1339 = vadd.f32 0.0, %v1338
      %v1340 = vpop.f32.mrb[0].mxu0
      %v1341 = vpop.f32.mrb[0].mxu0
      %v1342 = vadd.f32 0.0, %v1341
      %v1343 = vpop.f32.mrb[0].mxu0
      %1344 = vdwg.mxu0
      %v1345 = vadd.f32 %v1229, %v1323
      %v1346 = vadd.f32 %v1230, %v1326
      %v1347 = vadd.f32 %v1231, %v1331
      %v1348 = vadd.f32 %v1232, %v1334
      %v1349 = vadd.f32 %v1233, %v1339
      %v1350 = vadd.f32 %v1234, %v1342
      %v1351 = vld [vmem:[#allocation2] sm:$0xe0]
      %s1352 = scalar_lea.vmem %s3, 80
      %v1353 = vld [vmem:[%s1352] sm:$0xf]
      %v1354 = vld [vmem:[%s1352 + $0x4] sm:$0xf]
      %v1355 = vld [vmem:[%s1352 + $0x8] sm:$0xf]
      %v1356 = vld [vmem:[%s1352 + $0xc] sm:$0xf]
      %vm1359 = vcmask 1042432
      %v1360 = vrot.slane %v1351, 5
      %v1361 = vrot.slane %v839, 5
      %v1362 = vsel %vm1359, %v1360, %v1361
      %v1363 = vrot.slane %v840, 5
      %v1364 = vsel %vm1359, %v1361, %v1363
      %v1365 = vrot.slane %v1235, 5
      %v1366 = vsel %vm1359, %v1363, %v1365
      %v1371 = vunpack.c.l.b16 %v1353
      %v1372 = vunpack.c.l.b16 %v1354
      %v1373 = vunpack.c.l.b16 %v1355
      %v1374 = vunpack.c.l.b16 %v1356
      %v1375 = vpack.c.b16 %v1372, %v1371
      %v1376 = vpack.c.b16 %v1374, %v1373
      %v1380 = vsel %vm832, %v1362, 0
      %v1383 = vsel %vm832, %v1364, 0
      %v1386 = vsel %vm832, %v1366, 0
      %1388 = vmatprep.subr.bf16.mxu0 0
      %1389 = vmatpush1.bf16.msra.mxu0 %v1375
      %1390 = vmatprep.subr.bf16.mxu0 0
      %1391 = vmatpush1.bf16.msra.mxu0 %v1376
      %1392 = vmatprep.subr.bf16.mxu0 0
      %1393 = vmatpush1.bf16.msra.mxu0 0
      %1394 = vmatprep.subr.bf16.mxu0 0
      %1395 = vmatpush1.bf16.msra.mxu0 0
      %1396 = vmatprep.subr.bf16.mxu0 0
      %1397 = vmatpush1.bf16.msra.mxu0 0
      %1398 = vmatprep.subr.bf16.mxu0 0
      %1399 = vmatpush1.bf16.msra.mxu0 0
      %1400 = vmatprep.subr.bf16.mxu0 0
      %1401 = vmatpush1.bf16.msra.mxu0 0
      %1402 = vmatprep.subr.bf16.mxu0 0
      %1403 = vmatpush1.bf16.msra.mxu0 0
      %1404 = vmatprep.subr.bf16.mxu0 0
      %1405 = vmatpush1.bf16.msra.mxu0 0
      %1406 = vmatprep.subr.bf16.mxu0 0
      %1407 = vmatpush1.bf16.msra.mxu0 0
      %1408 = vmatprep.subr.bf16.mxu0 0
      %1409 = vmatpush1.bf16.msra.mxu0 0
      %1410 = vmatprep.subr.bf16.mxu0 0
      %1411 = vmatpush1.bf16.msra.mxu0 0
      %1412 = vmatprep.subr.bf16.mxu0 0
      %1413 = vmatpush1.bf16.msra.mxu0 0
      %1414 = vmatprep.subr.bf16.mxu0 0
      %1415 = vmatpush1.bf16.msra.mxu0 0
      %1416 = vmatprep.subr.bf16.mxu0 0
      %1417 = vmatpush1.bf16.msra.mxu0 0
      %1418 = vmatprep.subr.bf16.mxu0 0
      %1419 = vmatpush1.bf16.msra.mxu0 0
      %1420 = vmatprep.mubr.bf16.mxu0 0
      %1421 = vmatmul.mubr.bf16.gmra.mrb[0].mxu0 %v1380
      %v1422 = vpop.f32.mrb[0].mxu0
      %v1423 = vadd.f32 0.0, %v1422
      %v1424 = vpop.f32.mrb[0].mxu0
      %v1425 = vpop.f32.mrb[0].mxu0
      %v1426 = vadd.f32 0.0, %v1425
      %v1427 = vpop.f32.mrb[0].mxu0
      %1428 = vmatprep.mubr.bf16.mxu0 0
      %1429 = vmatmul.mubr.bf16.gmra.mrb[0].mxu0 %v1383
      %v1430 = vpop.f32.mrb[0].mxu0
      %v1431 = vadd.f32 0.0, %v1430
      %v1432 = vpop.f32.mrb[0].mxu0
      %v1433 = vpop.f32.mrb[0].mxu0
      %v1434 = vadd.f32 0.0, %v1433
      %v1435 = vpop.f32.mrb[0].mxu0
      %1436 = vmatprep.mubr.bf16.mxu0 0
      %1437 = vmatmul.mubr.bf16.gmra.mrb[0].mxu0 %v1386
      %v1438 = vpop.f32.mrb[0].mxu0
      %v1439 = vadd.f32 0.0, %v1438
      %v1440 = vpop.f32.mrb[0].mxu0
      %v1441 = vpop.f32.mrb[0].mxu0
      %v1442 = vadd.f32 0.0, %v1441
      %v1443 = vpop.f32.mrb[0].mxu0
      %1444 = vdwg.mxu0
      %v1445 = vadd.f32 %v1345, %v1423
      %v1446 = vadd.f32 %v1346, %v1426
      %v1447 = vadd.f32 %v1347, %v1431
      %v1448 = vadd.f32 %v1348, %v1434
      %v1449 = vadd.f32 %v1349, %v1439
      %v1450 = vadd.f32 %v1350, %v1442
      %v1451 = vld [vmem:[#allocation2 + $0x18] sm:$0xff]
      %s1452 = scalar_lea.vmem %s3, 96
      %v1453 = vld [vmem:[%s1452] sm:$0xf]
      %v1454 = vld [vmem:[%s1452 + $0x4] sm:$0xf]
      %v1455 = vld [vmem:[%s1452 + $0x8] sm:$0xf]
      %v1456 = vld [vmem:[%s1452 + $0xc] sm:$0xf]
      %v1461 = vunpack.c.l.b16 %v1453
      %v1462 = vunpack.c.l.b16 %v1454
      %v1463 = vunpack.c.l.b16 %v1455
      %v1464 = vunpack.c.l.b16 %v1456
      %v1465 = vpack.c.b16 %v1462, %v1461
      %v1466 = vpack.c.b16 %v1464, %v1463
      %v1470 = vsel %vm832, %v1451, 0
      %1472 = vmatprep.subr.bf16.mxu0 0
      %1473 = vmatpush1.bf16.msra.mxu0 %v1465
      %1474 = vmatprep.subr.bf16.mxu0 0
      %1475 = vmatpush1.bf16.msra.mxu0 %v1466
      %1476 = vmatprep.subr.bf16.mxu0 0
      %1477 = vmatpush1.bf16.msra.mxu0 0
      %1478 = vmatprep.subr.bf16.mxu0 0
      %1479 = vmatpush1.bf16.msra.mxu0 0
      %1480 = vmatprep.subr.bf16.mxu0 0
      %1481 = vmatpush1.bf16.msra.mxu0 0
      %1482 = vmatprep.subr.bf16.mxu0 0
      %1483 = vmatpush1.bf16.msra.mxu0 0
      %1484 = vmatprep.subr.bf16.mxu0 0
      %1485 = vmatpush1.bf16.msra.mxu0 0
      %1486 = vmatprep.subr.bf16.mxu0 0
      %1487 = vmatpush1.bf16.msra.mxu0 0
      %1488 = vmatprep.subr.bf16.mxu0 0
      %1489 = vmatpush1.bf16.msra.mxu0 0
      %1490 = vmatprep.subr.bf16.mxu0 0
      %1491 = vmatpush1.bf16.msra.mxu0 0
      %1492 = vmatprep.subr.bf16.mxu0 0
      %1493 = vmatpush1.bf16.msra.mxu0 0
      %1494 = vmatprep.subr.bf16.mxu0 0
      %1495 = vmatpush1.bf16.msra.mxu0 0
      %1496 = vmatprep.subr.bf16.mxu0 0
      %1497 = vmatpush1.bf16.msra.mxu0 0
      %1498 = vmatprep.subr.bf16.mxu0 0
      %1499 = vmatpush1.bf16.msra.mxu0 0
      %1500 = vmatprep.subr.bf16.mxu0 0
      %1501 = vmatpush1.bf16.msra.mxu0 0
      %1502 = vmatprep.subr.bf16.mxu0 0
      %1503 = vmatpush1.bf16.msra.mxu0 0
      %1504 = vmatprep.mubr.bf16.mxu0 0
      %1505 = vmatmul.mubr.bf16.gmra.mrb[0].mxu0 %v971
      %v1506 = vpop.f32.mrb[0].mxu0
      %v1507 = vadd.f32 0.0, %v1506
      %v1508 = vpop.f32.mrb[0].mxu0
      %v1509 = vpop.f32.mrb[0].mxu0
      %v1510 = vadd.f32 0.0, %v1509
      %v1511 = vpop.f32.mrb[0].mxu0
      %1512 = vmatprep.mubr.bf16.mxu0 0
      %1513 = vmatmul.mubr.bf16.gmra.mrb[0].mxu0 %v973
      %v1514 = vpop.f32.mrb[0].mxu0
      %v1515 = vadd.f32 0.0, %v1514
      %v1516 = vpop.f32.mrb[0].mxu0
      %v1517 = vpop.f32.mrb[0].mxu0
      %v1518 = vadd.f32 0.0, %v1517
      %v1519 = vpop.f32.mrb[0].mxu0
      %1520 = vmatprep.mubr.bf16.mxu0 0
      %1521 = vmatmul.mubr.bf16.gmra.mrb[0].mxu0 %v1470
      %v1522 = vpop.f32.mrb[0].mxu0
      %v1523 = vadd.f32 0.0, %v1522
      %v1524 = vpop.f32.mrb[0].mxu0
      %v1525 = vpop.f32.mrb[0].mxu0
      %v1526 = vadd.f32 0.0, %v1525
      %v1527 = vpop.f32.mrb[0].mxu0
      %1528 = vdwg.mxu0
      %v1529 = vadd.f32 %v1445, %v1507
      %v1530 = vadd.f32 %v1446, %v1510
      %v1531 = vadd.f32 %v1447, %v1515
      %v1532 = vadd.f32 %v1448, %v1518
      %v1533 = vadd.f32 %v1449, %v1523
      %v1534 = vadd.f32 %v1450, %v1526
      %v1535 = vld [vmem:[#allocation2 + $0x8] sm:$0xff]
      %v1536 = vld [vmem:[#allocation2 + $0x10] sm:$0xff]
      %v1537 = vld [vmem:[#allocation2 + $0x18] sm:$0xff]
      %v1538 = vld [vmem:[#allocation2 + $0x20] sm:$0x1]
      %s1539 = scalar_lea.vmem %s3, 112
      %v1540 = vld [vmem:[%s1539] sm:$0xf]
      %v1541 = vld [vmem:[%s1539 + $0x4] sm:$0xf]
      %v1542 = vld [vmem:[%s1539 + $0x8] sm:$0xf]
      %v1543 = vld [vmem:[%s1539 + $0xc] sm:$0xf]
      %v1545 = vshrl.u32 %v1535, 16
      %v1547 = vshll.u32 %v1535, 16
      %v1549 = vrot.slane %v1547, 1
      %v1550 = vor.u32 %v1545, %v1549
      %v1552 = vshll.u32 %v1536, 16
      %v1554 = vrot.slane %v1552, 1
      %v1555 = vsel %vm266, %v1550, %v1554
      %v1556 = vshrl.u32 %v1536, 16
      %v1558 = vor.u32 %v1556, %v1554
      %v1560 = vshll.u32 %v1537, 16
      %v1562 = vrot.slane %v1560, 1
      %v1563 = vsel %vm266, %v1558, %v1562
      %v1564 = vshrl.u32 %v1537, 16
      %v1566 = vor.u32 %v1564, %v1562
      %v1568 = vshll.u32 %v1538, 16
      %v1570 = vrot.slane %v1568, 1
      %v1571 = vsel %vm266, %v1566, %v1570
      %v1576 = vunpack.c.l.b16 %v1540
      %v1577 = vunpack.c.l.b16 %v1541
      %v1578 = vunpack.c.l.b16 %v1542
      %v1579 = vunpack.c.l.b16 %v1543
      %v1580 = vpack.c.b16 %v1577, %v1576
      %v1581 = vpack.c.b16 %v1579, %v1578
      %v1585 = vsel %vm832, %v1555, 0
      %v1588 = vsel %vm832, %v1563, 0
      %v1591 = vsel %vm832, %v1571, 0
      %1593 = vmatprep.subr.bf16.mxu0 0
      %1594 = vmatpush1.bf16.msra.mxu0 %v1580
      %1595 = vmatprep.subr.bf16.mxu0 0
      %1596 = vmatpush1.bf16.msra.mxu0 %v1581
      %1597 = vmatprep.subr.bf16.mxu0 0
      %1598 = vmatpush1.bf16.msra.mxu0 0
      %1599 = vmatprep.subr.bf16.mxu0 0
      %1600 = vmatpush1.bf16.msra.mxu0 0
      %1601 = vmatprep.subr.bf16.mxu0 0
      %1602 = vmatpush1.bf16.msra.mxu0 0
      %1603 = vmatprep.subr.bf16.mxu0 0
      %1604 = vmatpush1.bf16.msra.mxu0 0
      %1605 = vmatprep.subr.bf16.mxu0 0
      %1606 = vmatpush1.bf16.msra.mxu0 0
      %1607 = vmatprep.subr.bf16.mxu0 0
      %1608 = vmatpush1.bf16.msra.mxu0 0
      %1609 = vmatprep.subr.bf16.mxu0 0
      %1610 = vmatpush1.bf16.msra.mxu0 0
      %1611 = vmatprep.subr.bf16.mxu0 0
      %1612 = vmatpush1.bf16.msra.mxu0 0
      %1613 = vmatprep.subr.bf16.mxu0 0
      %1614 = vmatpush1.bf16.msra.mxu0 0
      %1615 = vmatprep.subr.bf16.mxu0 0
      %1616 = vmatpush1.bf16.msra.mxu0 0
      %1617 = vmatprep.subr.bf16.mxu0 0
      %1618 = vmatpush1.bf16.msra.mxu0 0
      %1619 = vmatprep.subr.bf16.mxu0 0
      %1620 = vmatpush1.bf16.msra.mxu0 0
      %1621 = vmatprep.subr.bf16.mxu0 0
      %1622 = vmatpush1.bf16.msra.mxu0 0
      %1623 = vmatprep.subr.bf16.mxu0 0
      %1624 = vmatpush1.bf16.msra.mxu0 0
      %1625 = vmatprep.mubr.bf16.mxu0 0
      %1626 = vmatmul.mubr.bf16.gmra.mrb[0].mxu0 %v1585
      %v1627 = vpop.f32.mrb[0].mxu0
      %v1628 = vadd.f32 0.0, %v1627
      %v1629 = vpop.f32.mrb[0].mxu0
      %v1630 = vpop.f32.mrb[0].mxu0
      %v1631 = vadd.f32 0.0, %v1630
      %v1632 = vpop.f32.mrb[0].mxu0
      %1633 = vmatprep.mubr.bf16.mxu0 0
      %1634 = vmatmul.mubr.bf16.gmra.mrb[0].mxu0 %v1588
      %v1635 = vpop.f32.mrb[0].mxu0
      %v1636 = vadd.f32 0.0, %v1635
      %v1637 = vpop.f32.mrb[0].mxu0
      %v1638 = vpop.f32.mrb[0].mxu0
      %v1639 = vadd.f32 0.0, %v1638
      %v1640 = vpop.f32.mrb[0].mxu0
      %1641 = vmatprep.mubr.bf16.mxu0 0
      %1642 = vmatmul.mubr.bf16.gmra.mrb[0].mxu0 %v1591
      %v1643 = vpop.f32.mrb[0].mxu0
      %v1644 = vadd.f32 0.0, %v1643
      %v1645 = vpop.f32.mrb[0].mxu0
      %v1646 = vpop.f32.mrb[0].mxu0
      %v1647 = vadd.f32 0.0, %v1646
      %v1648 = vpop.f32.mrb[0].mxu0
      %1649 = vdwg.mxu0
      %v1650 = vadd.f32 %v1529, %v1628
      %v1651 = vadd.f32 %v1530, %v1631
      %v1652 = vadd.f32 %v1531, %v1636
      %v1653 = vadd.f32 %v1532, %v1639
      %v1654 = vadd.f32 %v1533, %v1644
      %v1655 = vadd.f32 %v1534, %v1647
      %v1656 = vld [vmem:[#allocation2 + $0x8] sm:$0xfe]
      %s1657 = scalar_lea.vmem %s3, 128
      %v1658 = vld [vmem:[%s1657] sm:$0xf]
      %v1659 = vld [vmem:[%s1657 + $0x4] sm:$0xf]
      %v1660 = vld [vmem:[%s1657 + $0x8] sm:$0xf]
      %v1661 = vld [vmem:[%s1657 + $0xc] sm:$0xf]
      %v1666 = vrot.slane %v1656, 1
      %v1667 = vrot.slane %v1536, 1
      %v1668 = vsel %vm1042, %v1666, %v1667
      %v1669 = vrot.slane %v1537, 1
      %v1670 = vsel %vm1042, %v1667, %v1669
      %v1671 = vrot.slane %v1538, 1
      %v1672 = vsel %vm1042, %v1669, %v1671
      %v1677 = vunpack.c.l.b16 %v1658
      %v1678 = vunpack.c.l.b16 %v1659
      %v1679 = vunpack.c.l.b16 %v1660
      %v1680 = vunpack.c.l.b16 %v1661
      %v1681 = vpack.c.b16 %v1678, %v1677
      %v1682 = vpack.c.b16 %v1680, %v1679
      %v1686 = vsel %vm832, %v1668, 0
      %v1689 = vsel %vm832, %v1670, 0
      %v1692 = vsel %vm832, %v1672, 0
      %1694 = vmatprep.subr.bf16.mxu0 0
      %1695 = vmatpush1.bf16.msra.mxu0 %v1681
      %1696 = vmatprep.subr.bf16.mxu0 0
      %1697 = vmatpush1.bf16.msra.mxu0 %v1682
      %1698 = vmatprep.subr.bf16.mxu0 0
      %1699 = vmatpush1.bf16.msra.mxu0 0
      %1700 = vmatprep.subr.bf16.mxu0 0
      %1701 = vmatpush1.bf16.msra.mxu0 0
      %1702 = vmatprep.subr.bf16.mxu0 0
      %1703 = vmatpush1.bf16.msra.mxu0 0
      %1704 = vmatprep.subr.bf16.mxu0 0
      %1705 = vmatpush1.bf16.msra.mxu0 0
      %1706 = vmatprep.subr.bf16.mxu0 0
      %1707 = vmatpush1.bf16.msra.mxu0 0
      %1708 = vmatprep.subr.bf16.mxu0 0
      %1709 = vmatpush1.bf16.msra.mxu0 0
      %1710 = vmatprep.subr.bf16.mxu0 0
      %1711 = vmatpush1.bf16.msra.mxu0 0
      %1712 = vmatprep.subr.bf16.mxu0 0
      %1713 = vmatpush1.bf16.msra.mxu0 0
      %1714 = vmatprep.subr.bf16.mxu0 0
      %1715 = vmatpush1.bf16.msra.mxu0 0
      %1716 = vmatprep.subr.bf16.mxu0 0
      %1717 = vmatpush1.bf16.msra.mxu0 0
      %1718 = vmatprep.subr.bf16.mxu0 0
      %1719 = vmatpush1.bf16.msra.mxu0 0
      %1720 = vmatprep.subr.bf16.mxu0 0
      %1721 = vmatpush1.bf16.msra.mxu0 0
      %1722 = vmatprep.subr.bf16.mxu0 0
      %1723 = vmatpush1.bf16.msra.mxu0 0
      %1724 = vmatprep.subr.bf16.mxu0 0
      %1725 = vmatpush1.bf16.msra.mxu0 0
      %1726 = vmatprep.mubr.bf16.mxu0 0
      %1727 = vmatmul.mubr.bf16.gmra.mrb[0].mxu0 %v1686
      %v1728 = vpop.f32.mrb[0].mxu0
      %v1729 = vadd.f32 0.0, %v1728
      %v1730 = vpop.f32.mrb[0].mxu0
      %v1731 = vpop.f32.mrb[0].mxu0
      %v1732 = vadd.f32 0.0, %v1731
      %v1733 = vpop.f32.mrb[0].mxu0
      %1734 = vmatprep.mubr.bf16.mxu0 0
      %1735 = vmatmul.mubr.bf16.gmra.mrb[0].mxu0 %v1689
      %v1736 = vpop.f32.mrb[0].mxu0
      %v1737 = vadd.f32 0.0, %v1736
      %v1738 = vpop.f32.mrb[0].mxu0
      %v1739 = vpop.f32.mrb[0].mxu0
      %v1740 = vadd.f32 0.0, %v1739
      %v1741 = vpop.f32.mrb[0].mxu0
      %1742 = vmatprep.mubr.bf16.mxu0 0
      %1743 = vmatmul.mubr.bf16.gmra.mrb[0].mxu0 %v1692
      %v1744 = vpop.f32.mrb[0].mxu0
      %v1745 = vadd.f32 0.0, %v1744
      %v1746 = vpop.f32.mrb[0].mxu0
      %v1747 = vpop.f32.mrb[0].mxu0
      %v1748 = vadd.f32 0.0, %v1747
      %v1749 = vpop.f32.mrb[0].mxu0
      %1750 = vdwg.mxu0
      %v1751 = vadd.f32 %v1650, %v1729
      %v1752 = vadd.f32 %v1651, %v1732
      %v1753 = vadd.f32 %v1652, %v1737
      %v1754 = vadd.f32 %v1653, %v1740
      %v1755 = vadd.f32 %v1654, %v1745
      %v1756 = vadd.f32 %v1655, %v1748
      %v1757 = vld [vmem:[%s4] sm:$0x1]
      %v1759 = vlaneseq
      %v1760 = vshrl.u32 %v1759, 7
      %v1761 = vsub.s32 0, %v1760
      %v1762 = vrot.slane %v1757, %v1761
      %v1764 = vadd.f32 %v1751, %v1762
      %v1765 = vadd.f32 %v1752, %v1762
      %v1766 = vadd.f32 %v1753, %v1762
      %v1767 = vadd.f32 %v1754, %v1762
      %v1768 = vadd.f32 %v1755, %v1762
      %v1769 = vadd.f32 %v1756, %v1762
      %v1770 = vmax.f32 %v1764, 0.0
      %v1771 = vmax.f32 %v1765, 0.0
      %v1772 = vmax.f32 %v1766, 0.0
      %v1773 = vmax.f32 %v1767, 0.0
      %v1774 = vmax.f32 %v1768, 0.0
      %v1775 = vmax.f32 %v1769, 0.0
      %v1776 = vlaneseq
      %v1777 = vshrl.u32 %v1776, 7
      %v1778 = vadd.s32 %v1777, 8
      %v1779 = vadd.s32 %v1777, 16
      %v1780 = vadd.s32 %v1777, 24
      %v1781 = vadd.s32 %v1777, 32
      %v1782 = vadd.s32 %v1777, 40
      %vm1783 = vcmp.lt.s32.totalorder %v1777, 37
      %vm1784 = vcmp.lt.s32.totalorder %v1778, 37
      %vm1785 = vcmp.lt.s32.totalorder %v1779, 37
      %vm1786 = vcmp.lt.s32.totalorder %v1780, 37
      %vm1787 = vcmp.lt.s32.totalorder %v1781, 37
      %vm1788 = vcmp.lt.s32.totalorder %v1782, 37
      %vm1789 = vcmp.lt.s32.totalorder %v1777, 0
      %v1790 = vsub.s32 0, %v1777
      %v1791 = vsel %vm1789, %v1790, %v1777
      %v1792 = vshrl.u32 %v1791, 3
      %v1793 = vand.u32 %v1791, 7
      %v1794 = vsub.s32 0, %v1793
      %v1795 = vsel %vm1789, %v1794, %v1793
      %vm1796 = vcmp.lt.s32.totalorder %v1778, 0
      %v1797 = vsub.s32 0, %v1778
      %v1798 = vsel %vm1796, %v1797, %v1778
      %v1799 = vshrl.u32 %v1798, 3
      %v1800 = vand.u32 %v1798, 7
      %v1801 = vsub.s32 0, %v1800
      %v1802 = vsel %vm1796, %v1801, %v1800
      %vm1803 = vcmp.lt.s32.totalorder %v1779, 0
      %v1804 = vsub.s32 0, %v1779
      %v1805 = vsel %vm1803, %v1804, %v1779
      %v1806 = vshrl.u32 %v1805, 3
      %v1807 = vand.u32 %v1805, 7
      %v1808 = vsub.s32 0, %v1807
      %v1809 = vsel %vm1803, %v1808, %v1807
      %vm1810 = vcmp.lt.s32.totalorder %v1780, 0
      %v1811 = vsub.s32 0, %v1780
      %v1812 = vsel %vm1810, %v1811, %v1780
      %v1813 = vshrl.u32 %v1812, 3
      %v1814 = vand.u32 %v1812, 7
      %v1815 = vsub.s32 0, %v1814
      %v1816 = vsel %vm1810, %v1815, %v1814
      %vm1817 = vcmp.lt.s32.totalorder %v1781, 0
      %v1818 = vsub.s32 0, %v1781
      %v1819 = vsel %vm1817, %v1818, %v1781
      %v1820 = vshrl.u32 %v1819, 3
      %v1821 = vand.u32 %v1819, 7
      %v1822 = vsub.s32 0, %v1821
      %v1823 = vsel %vm1817, %v1822, %v1821
      %vm1824 = vcmp.lt.s32.totalorder %v1782, 0
      %v1825 = vsub.s32 0, %v1782
      %v1826 = vsel %vm1824, %v1825, %v1782
      %v1827 = vshrl.u32 %v1826, 3
      %v1828 = vand.u32 %v1826, 7
      %v1829 = vsub.s32 0, %v1828
      %v1830 = vsel %vm1824, %v1829, %v1828
      %vm1831 = vcmp.ne.s32.totalorder %v1795, 0
      %vm1832 = vcmp.ne.s32.totalorder %v1802, 0
      %vm1833 = vcmp.ne.s32.totalorder %v1809, 0
      %vm1834 = vcmp.ne.s32.totalorder %v1816, 0
      %vm1835 = vcmp.ne.s32.totalorder %v1823, 0
      %vm1836 = vcmp.ne.s32.totalorder %v1830, 0
      %vm1837 = vcmp.lt.s32.totalorder %v1795, 0
      %vm1838 = vcmp.lt.s32.totalorder %v1802, 0
      %vm1839 = vcmp.lt.s32.totalorder %v1809, 0
      %vm1840 = vcmp.lt.s32.totalorder %v1816, 0
      %vm1841 = vcmp.lt.s32.totalorder %v1823, 0
      %vm1842 = vcmp.lt.s32.totalorder %v1830, 0
      %vm1843 = vmand %vm1837, %vm1831
      %vm1844 = vmand %vm1838, %vm1832
      %vm1845 = vmand %vm1839, %vm1833
      %vm1846 = vmand %vm1840, %vm1834
      %vm1847 = vmand %vm1841, %vm1835
      %vm1848 = vmand %vm1842, %vm1836
      %v1849 = vadd.s32 %v1795, 8
      %v1850 = vadd.s32 %v1802, 8
      %v1851 = vadd.s32 %v1809, 8
      %v1852 = vadd.s32 %v1816, 8
      %v1853 = vadd.s32 %v1823, 8
      %v1854 = vadd.s32 %v1830, 8
      %v1855 = vsel %vm1843, %v1849, %v1795
      %v1856 = vsel %vm1844, %v1850, %v1802
      %v1857 = vsel %vm1845, %v1851, %v1809
      %v1858 = vsel %vm1846, %v1852, %v1816
      %v1859 = vsel %vm1847, %v1853, %v1823
      %v1860 = vsel %vm1848, %v1854, %v1830
      %vm1861 = vcmp.lt.s32.totalorder %v1855, 5
      %vm1862 = vcmp.lt.s32.totalorder %v1856, 5
      %vm1863 = vcmp.lt.s32.totalorder %v1857, 5
      %vm1864 = vcmp.lt.s32.totalorder %v1858, 5
      %vm1865 = vcmp.lt.s32.totalorder %v1859, 5
      %vm1866 = vcmp.lt.s32.totalorder %v1860, 5
      %vm1867 = vmand %vm1783, %vm1861
      %vm1868 = vmand %vm1784, %vm1862
      %vm1869 = vmand %vm1785, %vm1863
      %vm1870 = vmand %vm1786, %vm1864
      %vm1871 = vmand %vm1787, %vm1865
      %vm1872 = vmand %vm1788, %vm1866
      %v1873 = vsel %vm1867, 1, 0
      %v1874 = vsel %vm1868, 1, 0
      %v1875 = vsel %vm1869, 1, 0
      %v1876 = vsel %vm1870, 1, 0
      %v1877 = vsel %vm1871, 1, 0
      %v1878 = vsel %vm1872, 1, 0
      %vm1879 = vcmp.eq.s32.totalorder %v1873, 1
      %vm1880 = vcmp.eq.s32.totalorder %v1874, 1
      %vm1881 = vcmp.eq.s32.totalorder %v1875, 1
      %vm1882 = vcmp.eq.s32.totalorder %v1876, 1
      %vm1883 = vcmp.eq.s32.totalorder %v1877, 1
      %vm1884 = vcmp.eq.s32.totalorder %v1878, 1
      %v1885 = vsel %vm1879, %v1770, 0.0
      %v1886 = vsel %vm1880, %v1771, 0.0
      %v1887 = vsel %vm1881, %v1772, 0.0
      %v1888 = vsel %vm1882, %v1773, 0.0
      %v1889 = vsel %vm1883, %v1774, 0.0
      %v1890 = vsel %vm1884, %v1775, 0.0
      %v1891 = vadd.f32 %v1885, %v1886
      %v1892 = vadd.f32 %v1891, %v1887
      %v1893 = vadd.f32 %v1892, %v1888
      %v1894 = vadd.f32 %v1893, %v1889
      %v1895 = vadd.f32 %v1894, %v1890
      %v1896 = vrot.slane %v1895, 4
      %v1897 = vadd.f32 %v1895, %v1896
      %v1898 = vrot.slane %v1897, 2
      %v1899 = vadd.f32 %v1897, %v1898
      %v1900 = vrot.slane %v1899, 1
      %v1901 = vadd.f32 %v1899, %v1900
      %v1902 = vadd.f32 %v1901, 0.0
      %v1903 = vmul.f32 %v1902, 0.04
      %1904 = vst [vmem:[%s220] sm:$0x1] %v1903
      %p1905 = scmp.lt.s32.totalorder %s16, 1
      %s1906 = scalar_select %p1905, %s16, 1
      %s1907 = scalar_lea.vmem %s5, %s1906
      // Predicated region
      $region41: #{encoder_cnn_forward.2} parent=39 // pred_check
        %p1908 = pneg %p144
      $region42: #{encoder_cnn_forward.2} parent=39 // pred_check_branch
        %1910 = sbr.rel (%p1908) target = $region44
      $region43: #{encoder_cnn_forward.2} parent=39 // pred_region
        _
      $region44: #{encoder_cnn_forward.2} parent=39 // pred_fallthru
        _
    $region40: #{encoder_cnn_forward.2} parent=5 // pred_fallthru
      _
    %p1911 = scmp.le.s32.totalorder 2, %s11
    // Predicated region
    $region45: #{encoder_cnn_forward.2} parent=5 // pred_check
      %p1912 = pneg %p1911
    $region46: #{encoder_cnn_forward.2} parent=5 // pred_check_branch
      %1914 = sbr.rel (%p1912) target = $region48
    $region47: #{encoder_cnn_forward.2} parent=5 // pred_region
      %s1915 = ssub.s32 %s11, 2
      // Predicated region
      $region49: #{encoder_cnn_forward.2} parent=47 // pred_check
        %p1916 = pneg %p150
      $region50: #{encoder_cnn_forward.2} parent=47 // pred_check_branch
        %1918 = sbr.rel (%p1916) target = $region52
      $region51: #{encoder_cnn_forward.2} parent=47 // pred_region
        %p1919 = scmp.lt.s32.totalorder %s17, 1
        %s1920 = scalar_select %p1919, %s17, 1
        %s1921 = scalar_lea.vmem %s5, %s1920
      $region52: #{encoder_cnn_forward.2} parent=47 // pred_fallthru
        _
    $region48: #{encoder_cnn_forward.2} parent=5 // pred_fallthru
      _
  $region6: #{encoder_cnn_forward.2} parent=0 // loop_footer
    %s15 = sadd.s32 1, %s11
  $region7: #{encoder_cnn_forward.2} parent=0 // loop_footer_branch
    %10 = sbr.rel target = $region3
  $region8: #{encoder_cnn_forward.2} parent=0 // loop_exit
    _

</llo_original>
